<compile_context>
chip_gen: v7x
topology: tpu7x:2x2x1
jax: 0.10.0
libtpu: 0.0.40
codegen_flags: <defaults>
</compile_context>

<pallas_src>
import functools

import jax
import jax.numpy as jnp
from jax.experimental import pallas as pl
from jax.experimental.pallas import tpu as pltpu


# ----------------------------------------------------------------------------
# Fused kernel: canonicalize(space), canonicalize(surface), deform — one shot.
# ----------------------------------------------------------------------------
def _flow_arbitrary_kernel(pts_ref, stm_ref, w_ref, b_ref, v_ref, o_ref,
                           *, B, N, M, H, woff, boff, voff):
    f32 = jnp.float32
    BN, BM = B * N, B * M

    pts = pts_ref[...]                      # (BN+BM, 3) rows: [space | surface]
    stm = stm_ref[...]                      # (BM, 4)    cols: [surf_tgt | mask]

    # Static row-slices of the packed parameter slabs (8-aligned offsets).
    def wrow(i, r):
        return w_ref[woff[i]:woff[i] + r, :]

    def brow(i):
        return b_ref[boff[i]:boff[i] + 1, :]

    def vrow(i, r):
        return v_ref[voff[i]:voff[i] + r, :]

    c_we1, c_wd1x, c_we2, c_wd1g = wrow(0, 3), wrow(1, 3), wrow(2, H), wrow(3, H)
    d_we1, d_wd1x, d_we2, d_wd1g = wrow(4, 7), wrow(5, 3), wrow(6, H), wrow(7, H)
    c_be1, c_be2, c_bd1 = brow(0), brow(1), brow(2)
    d_be1, d_be2, d_bd1 = brow(3), brow(4), brow(5)
    c_wd2, d_wd2 = vrow(0, H), vrow(1, H)
    c_bd2, d_bd2 = vrow(2, 1), vrow(3, 1)

    def mm3(x, w3):
        # (rows,3) @ (3,H) realized as three VPU multiply-adds (keeps the K=3
        # contraction off the MXU and its result FIFO).
        return (x[:, 0:1] * w3[0:1, :] + x[:, 1:2] * w3[1:2, :]
                + x[:, 2:3] * w3[2:3, :])

    def pool_proj(h, we2, be2, wd1g):
        # Encoder 2nd layer, per-batch max-pool, global-feature projection —
        # one stacked (B,H)@(H,H) dot instead of B degenerate (1,H) dots.
        h = jnp.dot(h, we2, preferred_element_type=f32) + be2        # (BM, H)
        g = jnp.max(h.reshape(B, M, H), axis=1)                      # (B, H)
        return jnp.dot(g, wd1g, preferred_element_type=f32)          # (B, H)

    def tile_rows(g, rows):
        # Replicate each batch's (1,H) global row over `rows` points.
        return jnp.broadcast_to(g[:, None, :], (B, rows, H)).reshape(B * rows, H)

    # ---- canonicalize encoder (cond = surf_src, shared by both calls) ------
    surf_src = pts[BN:, :]                                           # (BM, 3)
    h = jnp.maximum(mm3(surf_src, c_we1) + c_be1, 0.0)
    g_c = pool_proj(h, c_we2, c_be2, c_wd1g)                         # (B, H)

    # ---- canonicalize decoder, fused over space + surface rows -------------
    g_all = jnp.concatenate([tile_rows(g_c, N), tile_rows(g_c, M)], axis=0)
    d = jnp.maximum(mm3(pts, c_wd1x) + g_all + c_bd1, 0.0)           # (BN+BM, H)
    cano = pts + jnp.dot(d, c_wd2, preferred_element_type=f32) + c_bd2
    x_cano = cano[:BN, :]                                            # (BN, 3)
    s_cano = cano[BN:, :]                                            # (BM, 3)

    # ---- deform encoder: cat([s_cano, surf_tgt, mask]) as split matmul -----
    h = jnp.maximum(mm3(s_cano, d_we1[0:3, :])
                    + mm3(stm[:, 0:3], d_we1[3:6, :])
                    + stm[:, 3:4] * d_we1[6:7, :]
                    + d_be1, 0.0)                                    # (BM, H)
    g_d = pool_proj(h, d_we2, d_be2, d_wd1g)                         # (B, H)

    # ---- deform decoder on canonicalized space points -----------------------
    dd = jnp.maximum(mm3(x_cano, d_wd1x) + tile_rows(g_d, N) + d_bd1, 0.0)
    o_ref[...] = (x_cano
                  + jnp.dot(dd, d_wd2, preferred_element_type=f32)
                  + d_bd2)


# ----------------------------------------------------------------------------
# Host-side slab packing: stack 2-D blocks row-wise, 8-aligned static offsets.
# ----------------------------------------------------------------------------
def _pack_rows(mats):
    blocks, offs, off = [], [], 0
    for m in mats:
        r, c = m.shape
        pad = (-r) % 8
        if pad:
            m = jnp.concatenate([m, jnp.zeros((pad, c), m.dtype)], axis=0)
        blocks.append(m)
        offs.append(off)
        off += r + pad
    return jnp.concatenate(blocks, axis=0), tuple(offs)


# ----------------------------------------------------------------------------
# Parameters for one synthetic conditional flow module.
# ----------------------------------------------------------------------------
def init_flow_params(key, cond_dim, hidden=32, coord=3, scale=0.1):
    ks = jax.random.split(key, 5)
    f32 = jnp.float32
    return dict(
        we1=scale * jax.random.normal(ks[0], (cond_dim, hidden), f32),
        be1=jnp.zeros((1, hidden), f32),
        we2=scale * jax.random.normal(ks[1], (hidden, hidden), f32),
        be2=jnp.zeros((1, hidden), f32),
        wd1x=scale * jax.random.normal(ks[2], (coord, hidden), f32),
        wd1g=scale * jax.random.normal(ks[3], (hidden, hidden), f32),
        bd1=jnp.zeros((1, hidden), f32),
        wd2=scale * jax.random.normal(ks[4], (hidden, coord), f32),
        bd2=jnp.zeros((1, coord), f32),
    )


# ----------------------------------------------------------------------------
# FlowArbitrary.forward — single fused, grid-less pallas_call.
# ----------------------------------------------------------------------------
@jax.jit
def flow_arbitrary(space_samples_src, surface_samples_src, surface_samples_tgt,
                   cano_handle_sample_mask, cano_params, deform_params):
    B, N, Dx = space_samples_src.shape
    _, M, _ = surface_samples_src.shape
    H = cano_params["we2"].shape[0]
    assert Dx == 3, "coordinate dim must be 3"
    assert N % 8 == 0 and M % 8 == 0 and H % 8 == 0, \
        "N, M, H must be multiples of 8 for aligned sublane blocks"

    f32 = jnp.float32
    xs = space_samples_src.reshape(B * N, Dx).astype(f32)
    ss = surface_samples_src.reshape(B * M, Dx).astype(f32)
    st = surface_samples_tgt.reshape(B * M, Dx).astype(f32)
    mk = cano_handle_sample_mask.reshape(B * M, 1).astype(f32)

    pts = jnp.concatenate([xs, ss], axis=0)            # (B*(N+M), 3)
    stm = jnp.concatenate([st, mk], axis=1)            # (B*M, 4)

    cp, dp = cano_params, deform_params
    w_slab, woff = _pack_rows([cp["we1"], cp["wd1x"], cp["we2"], cp["wd1g"],
                               dp["we1"], dp["wd1x"], dp["we2"], dp["wd1g"]])
    b_slab, boff = _pack_rows([cp["be1"], cp["be2"], cp["bd1"],
                               dp["be1"], dp["be2"], dp["bd1"]])
    v_slab, voff = _pack_rows([cp["wd2"], dp["wd2"], cp["bd2"], dp["bd2"]])

    rows_all = B * (N + M)
    flops = (2 * B * M * 3 * H + 2 * B * M * H * H + 2 * B * H * H        # cano enc
             + 2 * rows_all * 3 * H + 2 * rows_all * H * 3                # cano dec
             + 2 * B * M * 7 * H + 2 * B * M * H * H + 2 * B * H * H      # deform enc
             + 2 * B * N * 3 * H + 2 * B * N * H * 3)                     # deform dec
    bytes_accessed = 4 * (pts.size + stm.size + w_slab.size + b_slab.size
                          + v_slab.size + B * N * Dx)

    vmem = pl.BlockSpec(memory_space=pltpu.MemorySpace.VMEM)
    out = pl.pallas_call(
        functools.partial(_flow_arbitrary_kernel, B=B, N=N, M=M, H=H,
                          woff=woff, boff=boff, voff=voff),
        in_specs=[vmem] * 5,
        out_specs=vmem,
        out_shape=jax.ShapeDtypeStruct((B * N, Dx), jnp.float32),
        cost_estimate=pl.CostEstimate(flops=flops, transcendentals=0,
                                      bytes_accessed=bytes_accessed),
    )(pts, stm, w_slab, b_slab, v_slab)
    return out.reshape(B, N, Dx)


# ----------------------------------------------------------------------------
# Pure-JAX reference (concat-based, per-batch) for correctness check.
# ----------------------------------------------------------------------------
def _conditional_flow_ref(x, cond, p):
    f32 = jnp.float32
    hi = jax.lax.Precision.HIGHEST
    h = jnp.maximum(jnp.einsum("bmc,ch->bmh", cond, p["we1"], precision=hi,
                               preferred_element_type=f32) + p["be1"], 0.0)
    h = jnp.einsum("bmh,hk->bmk", h, p["we2"], precision=hi,
                   preferred_element_type=f32) + p["be2"]
    g = jnp.max(h, axis=1, keepdims=True)                           # (B, 1, H)
    d = jnp.maximum(
        jnp.einsum("bnc,ch->bnh", x, p["wd1x"], precision=hi,
                   preferred_element_type=f32)
        + jnp.einsum("bih,hk->bik", g, p["wd1g"], precision=hi,
                     preferred_element_type=f32)
        + p["bd1"], 0.0)
    delta = jnp.einsum("bnh,hc->bnc", d, p["wd2"], precision=hi,
                       preferred_element_type=f32) + p["bd2"]
    return x + delta


def flow_arbitrary_ref(space_src, surf_src, surf_tgt, mask, cp, dp):
    x_cano = _conditional_flow_ref(space_src, surf_src, cp)
    s_cano = _conditional_flow_ref(surf_src, surf_src, cp)
    cond = jnp.concatenate([s_cano, surf_tgt, mask], axis=-1)
    return _conditional_flow_ref(x_cano, cond, dp)


if __name__ == "__main__":
    key = jax.random.PRNGKey(0)
    kx, ks, kt, km, kp1, kp2 = jax.random.split(key, 6)

    B, N, M, H = 2, 64, 64, 32          # batch, space pts, surface pts, hidden
    space_src = jax.random.normal(kx, (B, N, 3), jnp.float32)
    surf_src = jax.random.normal(ks, (B, M, 3), jnp.float32)
    surf_tgt = jax.random.normal(kt, (B, M, 3), jnp.float32)
    mask = (jax.random.uniform(km, (B, M, 1)) > 0.5).astype(jnp.float32)

    cano_params = init_flow_params(kp1, cond_dim=3, hidden=H)        # (x, surf)
    deform_params = init_flow_params(kp2, cond_dim=3 + 3 + 1, hidden=H)

    out = flow_arbitrary(space_src, surf_src, surf_tgt, mask,
                         cano_params, deform_params)
    jax.block_until_ready(out)
    assert out.shape == (B, N, 3) and out.dtype == jnp.float32

    ref = flow_arbitrary_ref(space_src, surf_src, surf_tgt, mask,
                             cano_params, deform_params)
    assert bool(jnp.allclose(out, ref, rtol=5e-3, atol=5e-3)), "mismatch vs ref"

    print("KERNEL_OK")
</pallas_src>

<mosaic_0001>
module attributes {stable_mosaic.version = 11 : i64} {
  func.func @_flow_arbitrary_kernel(%arg0: memref<256x3xf32, #tpu.memory_space<vmem>>, %arg1: memref<128x4xf32, #tpu.memory_space<vmem>>, %arg2: memref<160x32xf32, #tpu.memory_space<vmem>>, %arg3: memref<48x32xf32, #tpu.memory_space<vmem>>, %arg4: memref<80x3xf32, #tpu.memory_space<vmem>>, %arg5: memref<128x3xf32, #tpu.memory_space<vmem>>) attributes {dimension_semantics = [], scalar_prefetch = 0 : i64, scratch_operands = 0 : i64, tpu.core_type = #tpu.core_type<tc>} {
    %c0 = arith.constant 0 : index
    %c0_0 = arith.constant 0 : index
    %0 = vector.load %arg0[%c0, %c0_0] : memref<256x3xf32, #tpu.memory_space<vmem>>, vector<256x3xf32>
    %c0_1 = arith.constant 0 : index
    %c0_2 = arith.constant 0 : index
    %1 = vector.load %arg1[%c0_1, %c0_2] : memref<128x4xf32, #tpu.memory_space<vmem>>, vector<128x4xf32>
    %c0_3 = arith.constant 0 : index
    %c0_4 = arith.constant 0 : index
    %2 = vector.load %arg2[%c0_3, %c0_4] : memref<160x32xf32, #tpu.memory_space<vmem>>, vector<3x32xf32>
    %c8 = arith.constant 8 : index
    %c0_5 = arith.constant 0 : index
    %3 = vector.load %arg2[%c8, %c0_5] : memref<160x32xf32, #tpu.memory_space<vmem>>, vector<3x32xf32>
    %c16 = arith.constant 16 : index
    %c0_6 = arith.constant 0 : index
    %4 = vector.load %arg2[%c16, %c0_6] : memref<160x32xf32, #tpu.memory_space<vmem>>, vector<32x32xf32>
    %c48 = arith.constant 48 : index
    %c0_7 = arith.constant 0 : index
    %5 = vector.load %arg2[%c48, %c0_7] : memref<160x32xf32, #tpu.memory_space<vmem>>, vector<32x32xf32>
    %c80 = arith.constant 80 : index
    %c0_8 = arith.constant 0 : index
    %6 = vector.load %arg2[%c80, %c0_8] : memref<160x32xf32, #tpu.memory_space<vmem>>, vector<7x32xf32>
    %c88 = arith.constant 88 : index
    %c0_9 = arith.constant 0 : index
    %7 = vector.load %arg2[%c88, %c0_9] : memref<160x32xf32, #tpu.memory_space<vmem>>, vector<3x32xf32>
    %c96 = arith.constant 96 : index
    %c0_10 = arith.constant 0 : index
    %8 = vector.load %arg2[%c96, %c0_10] : memref<160x32xf32, #tpu.memory_space<vmem>>, vector<32x32xf32>
    %c128 = arith.constant 128 : index
    %c0_11 = arith.constant 0 : index
    %9 = vector.load %arg2[%c128, %c0_11] : memref<160x32xf32, #tpu.memory_space<vmem>>, vector<32x32xf32>
    %c0_12 = arith.constant 0 : index
    %c0_13 = arith.constant 0 : index
    %10 = vector.load %arg3[%c0_12, %c0_13] : memref<48x32xf32, #tpu.memory_space<vmem>>, vector<1x32xf32>
    %c8_14 = arith.constant 8 : index
    %c0_15 = arith.constant 0 : index
    %11 = vector.load %arg3[%c8_14, %c0_15] : memref<48x32xf32, #tpu.memory_space<vmem>>, vector<1x32xf32>
    %c16_16 = arith.constant 16 : index
    %c0_17 = arith.constant 0 : index
    %12 = vector.load %arg3[%c16_16, %c0_17] : memref<48x32xf32, #tpu.memory_space<vmem>>, vector<1x32xf32>
    %c24 = arith.constant 24 : index
    %c0_18 = arith.constant 0 : index
    %13 = vector.load %arg3[%c24, %c0_18] : memref<48x32xf32, #tpu.memory_space<vmem>>, vector<1x32xf32>
    %c32 = arith.constant 32 : index
    %c0_19 = arith.constant 0 : index
    %14 = vector.load %arg3[%c32, %c0_19] : memref<48x32xf32, #tpu.memory_space<vmem>>, vector<1x32xf32>
    %c40 = arith.constant 40 : index
    %c0_20 = arith.constant 0 : index
    %15 = vector.load %arg3[%c40, %c0_20] : memref<48x32xf32, #tpu.memory_space<vmem>>, vector<1x32xf32>
    %c0_21 = arith.constant 0 : index
    %c0_22 = arith.constant 0 : index
    %16 = vector.load %arg4[%c0_21, %c0_22] : memref<80x3xf32, #tpu.memory_space<vmem>>, vector<32x3xf32>
    %c32_23 = arith.constant 32 : index
    %c0_24 = arith.constant 0 : index
    %17 = vector.load %arg4[%c32_23, %c0_24] : memref<80x3xf32, #tpu.memory_space<vmem>>, vector<32x3xf32>
    %c64 = arith.constant 64 : index
    %c0_25 = arith.constant 0 : index
    %18 = vector.load %arg4[%c64, %c0_25] : memref<80x3xf32, #tpu.memory_space<vmem>>, vector<1x3xf32>
    %c72 = arith.constant 72 : index
    %c0_26 = arith.constant 0 : index
    %19 = vector.load %arg4[%c72, %c0_26] : memref<80x3xf32, #tpu.memory_space<vmem>>, vector<1x3xf32>
    %20 = vector.extract_strided_slice %0 {offsets = [128, 0], sizes = [128, 3], strides = [1, 1]} : vector<256x3xf32> to vector<128x3xf32>
    %21 = vector.extract_strided_slice %20 {offsets = [0, 0], sizes = [128, 1], strides = [1, 1]} : vector<128x3xf32> to vector<128x1xf32>
    %22 = vector.extract_strided_slice %2 {offsets = [0, 0], sizes = [1, 32], strides = [1, 1]} : vector<3x32xf32> to vector<1x32xf32>
    %23 = vector.broadcast %21 : vector<128x1xf32> to vector<128x32xf32>
    %24 = vector.broadcast %22 : vector<1x32xf32> to vector<128x32xf32>
    %25 = arith.mulf %23, %24 : vector<128x32xf32>
    %26 = vector.extract_strided_slice %20 {offsets = [0, 1], sizes = [128, 1], strides = [1, 1]} : vector<128x3xf32> to vector<128x1xf32>
    %27 = vector.extract_strided_slice %2 {offsets = [1, 0], sizes = [1, 32], strides = [1, 1]} : vector<3x32xf32> to vector<1x32xf32>
    %28 = vector.broadcast %26 : vector<128x1xf32> to vector<128x32xf32>
    %29 = vector.broadcast %27 : vector<1x32xf32> to vector<128x32xf32>
    %30 = arith.mulf %28, %29 : vector<128x32xf32>
    %31 = arith.addf %25, %30 : vector<128x32xf32>
    %32 = vector.extract_strided_slice %20 {offsets = [0, 2], sizes = [128, 1], strides = [1, 1]} : vector<128x3xf32> to vector<128x1xf32>
    %33 = vector.extract_strided_slice %2 {offsets = [2, 0], sizes = [1, 32], strides = [1, 1]} : vector<3x32xf32> to vector<1x32xf32>
    %34 = vector.broadcast %32 : vector<128x1xf32> to vector<128x32xf32>
    %35 = vector.broadcast %33 : vector<1x32xf32> to vector<128x32xf32>
    %36 = arith.mulf %34, %35 : vector<128x32xf32>
    %37 = arith.addf %31, %36 : vector<128x32xf32>
    %38 = vector.broadcast %10 : vector<1x32xf32> to vector<128x32xf32>
    %39 = arith.addf %37, %38 : vector<128x32xf32>
    %cst = arith.constant 0.000000e+00 : f32
    %40 = vector.broadcast %cst : f32 to vector<128x32xf32>
    %41 = arith.maximumf %39, %40 : vector<128x32xf32>
    %cst_27 = arith.constant dense<0.000000e+00> : vector<128x32xf32>
    %42 = tpu.matmul %41, %4, %cst_27 {dimension_numbers = #tpu.dot_dimension_numbers<[1], [0], [0], [1], [0, 0, 1, 1], [], []>} : vector<128x32xf32>, vector<32x32xf32>, vector<128x32xf32> -> vector<128x32xf32>
    %43 = vector.broadcast %11 : vector<1x32xf32> to vector<128x32xf32>
    %44 = arith.addf %42, %43 : vector<128x32xf32>
    %45 = vector.shape_cast %44 : vector<128x32xf32> to vector<2x64x32xf32>
    %cst_28 = arith.constant dense<0xFF800000> : vector<2x32xf32>
    %46 = vector.multi_reduction <maximumf>, %45, %cst_28 [1] : vector<2x64x32xf32> to vector<2x32xf32>
    %cst_29 = arith.constant dense<0.000000e+00> : vector<2x32xf32>
    %47 = tpu.matmul %46, %5, %cst_29 {dimension_numbers = #tpu.dot_dimension_numbers<[1], [0], [0], [1], [0, 0, 1, 1], [], []>} : vector<2x32xf32>, vector<32x32xf32>, vector<2x32xf32> -> vector<2x32xf32>
    %48 = vector.shape_cast %47 : vector<2x32xf32> to vector<2x1x32xf32>
    %49 = vector.shape_cast %48 : vector<2x1x32xf32> to vector<2x1x32xf32>
    %50 = vector.broadcast %49 : vector<2x1x32xf32> to vector<2x64x32xf32>
    %51 = vector.shape_cast %50 : vector<2x64x32xf32> to vector<128x32xf32>
    %52 = vector.shape_cast %47 : vector<2x32xf32> to vector<2x1x32xf32>
    %53 = vector.shape_cast %52 : vector<2x1x32xf32> to vector<2x1x32xf32>
    %54 = vector.broadcast %53 : vector<2x1x32xf32> to vector<2x64x32xf32>
    %55 = vector.shape_cast %54 : vector<2x64x32xf32> to vector<128x32xf32>
    %56 = tpu.concatenate %51, %55 in 0 : vector<128x32xf32>, vector<128x32xf32> -> vector<256x32xf32>
    %57 = vector.extract_strided_slice %0 {offsets = [0, 0], sizes = [256, 1], strides = [1, 1]} : vector<256x3xf32> to vector<256x1xf32>
    %58 = vector.extract_strided_slice %3 {offsets = [0, 0], sizes = [1, 32], strides = [1, 1]} : vector<3x32xf32> to vector<1x32xf32>
    %59 = vector.broadcast %57 : vector<256x1xf32> to vector<256x32xf32>
    %60 = vector.broadcast %58 : vector<1x32xf32> to vector<256x32xf32>
    %61 = arith.mulf %59, %60 : vector<256x32xf32>
    %62 = vector.extract_strided_slice %0 {offsets = [0, 1], sizes = [256, 1], strides = [1, 1]} : vector<256x3xf32> to vector<256x1xf32>
    %63 = vector.extract_strided_slice %3 {offsets = [1, 0], sizes = [1, 32], strides = [1, 1]} : vector<3x32xf32> to vector<1x32xf32>
    %64 = vector.broadcast %62 : vector<256x1xf32> to vector<256x32xf32>
    %65 = vector.broadcast %63 : vector<1x32xf32> to vector<256x32xf32>
    %66 = arith.mulf %64, %65 : vector<256x32xf32>
    %67 = arith.addf %61, %66 : vector<256x32xf32>
    %68 = vector.extract_strided_slice %0 {offsets = [0, 2], sizes = [256, 1], strides = [1, 1]} : vector<256x3xf32> to vector<256x1xf32>
    %69 = vector.extract_strided_slice %3 {offsets = [2, 0], sizes = [1, 32], strides = [1, 1]} : vector<3x32xf32> to vector<1x32xf32>
    %70 = vector.broadcast %68 : vector<256x1xf32> to vector<256x32xf32>
    %71 = vector.broadcast %69 : vector<1x32xf32> to vector<256x32xf32>
    %72 = arith.mulf %70, %71 : vector<256x32xf32>
    %73 = arith.addf %67, %72 : vector<256x32xf32>
    %74 = arith.addf %73, %56 : vector<256x32xf32>
    %75 = vector.broadcast %12 : vector<1x32xf32> to vector<256x32xf32>
    %76 = arith.addf %74, %75 : vector<256x32xf32>
    %cst_30 = arith.constant 0.000000e+00 : f32
    %77 = vector.broadcast %cst_30 : f32 to vector<256x32xf32>
    %78 = arith.maximumf %76, %77 : vector<256x32xf32>
    %cst_31 = arith.constant dense<0.000000e+00> : vector<256x3xf32>
    %79 = tpu.matmul %78, %16, %cst_31 {dimension_numbers = #tpu.dot_dimension_numbers<[1], [0], [0], [1], [0, 0, 1, 1], [], []>} : vector<256x32xf32>, vector<32x3xf32>, vector<256x3xf32> -> vector<256x3xf32>
    %80 = arith.addf %0, %79 : vector<256x3xf32>
    %81 = vector.broadcast %18 : vector<1x3xf32> to vector<256x3xf32>
    %82 = arith.addf %80, %81 : vector<256x3xf32>
    %83 = vector.extract_strided_slice %82 {offsets = [0, 0], sizes = [128, 3], strides = [1, 1]} : vector<256x3xf32> to vector<128x3xf32>
    %84 = vector.extract_strided_slice %82 {offsets = [128, 0], sizes = [128, 3], strides = [1, 1]} : vector<256x3xf32> to vector<128x3xf32>
    %85 = vector.extract_strided_slice %6 {offsets = [0, 0], sizes = [3, 32], strides = [1, 1]} : vector<7x32xf32> to vector<3x32xf32>
    %86 = vector.extract_strided_slice %84 {offsets = [0, 0], sizes = [128, 1], strides = [1, 1]} : vector<128x3xf32> to vector<128x1xf32>
    %87 = vector.extract_strided_slice %85 {offsets = [0, 0], sizes = [1, 32], strides = [1, 1]} : vector<3x32xf32> to vector<1x32xf32>
    %88 = vector.broadcast %86 : vector<128x1xf32> to vector<128x32xf32>
    %89 = vector.broadcast %87 : vector<1x32xf32> to vector<128x32xf32>
    %90 = arith.mulf %88, %89 : vector<128x32xf32>
    %91 = vector.extract_strided_slice %84 {offsets = [0, 1], sizes = [128, 1], strides = [1, 1]} : vector<128x3xf32> to vector<128x1xf32>
    %92 = vector.extract_strided_slice %85 {offsets = [1, 0], sizes = [1, 32], strides = [1, 1]} : vector<3x32xf32> to vector<1x32xf32>
    %93 = vector.broadcast %91 : vector<128x1xf32> to vector<128x32xf32>
    %94 = vector.broadcast %92 : vector<1x32xf32> to vector<128x32xf32>
    %95 = arith.mulf %93, %94 : vector<128x32xf32>
    %96 = arith.addf %90, %95 : vector<128x32xf32>
    %97 = vector.extract_strided_slice %84 {offsets = [0, 2], sizes = [128, 1], strides = [1, 1]} : vector<128x3xf32> to vector<128x1xf32>
    %98 = vector.extract_strided_slice %85 {offsets = [2, 0], sizes = [1, 32], strides = [1, 1]} : vector<3x32xf32> to vector<1x32xf32>
    %99 = vector.broadcast %97 : vector<128x1xf32> to vector<128x32xf32>
    %100 = vector.broadcast %98 : vector<1x32xf32> to vector<128x32xf32>
    %101 = arith.mulf %99, %100 : vector<128x32xf32>
    %102 = arith.addf %96, %101 : vector<128x32xf32>
    %103 = vector.extract_strided_slice %1 {offsets = [0, 0], sizes = [128, 3], strides = [1, 1]} : vector<128x4xf32> to vector<128x3xf32>
    %104 = vector.extract_strided_slice %6 {offsets = [3, 0], sizes = [3, 32], strides = [1, 1]} : vector<7x32xf32> to vector<3x32xf32>
    %105 = vector.extract_strided_slice %103 {offsets = [0, 0], sizes = [128, 1], strides = [1, 1]} : vector<128x3xf32> to vector<128x1xf32>
    %106 = vector.extract_strided_slice %104 {offsets = [0, 0], sizes = [1, 32], strides = [1, 1]} : vector<3x32xf32> to vector<1x32xf32>
    %107 = vector.broadcast %105 : vector<128x1xf32> to vector<128x32xf32>
    %108 = vector.broadcast %106 : vector<1x32xf32> to vector<128x32xf32>
    %109 = arith.mulf %107, %108 : vector<128x32xf32>
    %110 = vector.extract_strided_slice %103 {offsets = [0, 1], sizes = [128, 1], strides = [1, 1]} : vector<128x3xf32> to vector<128x1xf32>
    %111 = vector.extract_strided_slice %104 {offsets = [1, 0], sizes = [1, 32], strides = [1, 1]} : vector<3x32xf32> to vector<1x32xf32>
    %112 = vector.broadcast %110 : vector<128x1xf32> to vector<128x32xf32>
    %113 = vector.broadcast %111 : vector<1x32xf32> to vector<128x32xf32>
    %114 = arith.mulf %112, %113 : vector<128x32xf32>
    %115 = arith.addf %109, %114 : vector<128x32xf32>
    %116 = vector.extract_strided_slice %103 {offsets = [0, 2], sizes = [128, 1], strides = [1, 1]} : vector<128x3xf32> to vector<128x1xf32>
    %117 = vector.extract_strided_slice %104 {offsets = [2, 0], sizes = [1, 32], strides = [1, 1]} : vector<3x32xf32> to vector<1x32xf32>
    %118 = vector.broadcast %116 : vector<128x1xf32> to vector<128x32xf32>
    %119 = vector.broadcast %117 : vector<1x32xf32> to vector<128x32xf32>
    %120 = arith.mulf %118, %119 : vector<128x32xf32>
    %121 = arith.addf %115, %120 : vector<128x32xf32>
    %122 = arith.addf %102, %121 : vector<128x32xf32>
    %123 = vector.extract_strided_slice %1 {offsets = [0, 3], sizes = [128, 1], strides = [1, 1]} : vector<128x4xf32> to vector<128x1xf32>
    %124 = vector.extract_strided_slice %6 {offsets = [6, 0], sizes = [1, 32], strides = [1, 1]} : vector<7x32xf32> to vector<1x32xf32>
    %125 = vector.broadcast %123 : vector<128x1xf32> to vector<128x32xf32>
    %126 = vector.broadcast %124 : vector<1x32xf32> to vector<128x32xf32>
    %127 = arith.mulf %125, %126 : vector<128x32xf32>
    %128 = arith.addf %122, %127 : vector<128x32xf32>
    %129 = vector.broadcast %13 : vector<1x32xf32> to vector<128x32xf32>
    %130 = arith.addf %128, %129 : vector<128x32xf32>
    %cst_32 = arith.constant 0.000000e+00 : f32
    %131 = vector.broadcast %cst_32 : f32 to vector<128x32xf32>
    %132 = arith.maximumf %130, %131 : vector<128x32xf32>
    %cst_33 = arith.constant dense<0.000000e+00> : vector<128x32xf32>
    %133 = tpu.matmul %132, %8, %cst_33 {dimension_numbers = #tpu.dot_dimension_numbers<[1], [0], [0], [1], [0, 0, 1, 1], [], []>} : vector<128x32xf32>, vector<32x32xf32>, vector<128x32xf32> -> vector<128x32xf32>
    %134 = vector.broadcast %14 : vector<1x32xf32> to vector<128x32xf32>
    %135 = arith.addf %133, %134 : vector<128x32xf32>
    %136 = vector.shape_cast %135 : vector<128x32xf32> to vector<2x64x32xf32>
    %cst_34 = arith.constant dense<0xFF800000> : vector<2x32xf32>
    %137 = vector.multi_reduction <maximumf>, %136, %cst_34 [1] : vector<2x64x32xf32> to vector<2x32xf32>
    %cst_35 = arith.constant dense<0.000000e+00> : vector<2x32xf32>
    %138 = tpu.matmul %137, %9, %cst_35 {dimension_numbers = #tpu.dot_dimension_numbers<[1], [0], [0], [1], [0, 0, 1, 1], [], []>} : vector<2x32xf32>, vector<32x32xf32>, vector<2x32xf32> -> vector<2x32xf32>
    %139 = vector.extract_strided_slice %83 {offsets = [0, 0], sizes = [128, 1], strides = [1, 1]} : vector<128x3xf32> to vector<128x1xf32>
    %140 = vector.extract_strided_slice %7 {offsets = [0, 0], sizes = [1, 32], strides = [1, 1]} : vector<3x32xf32> to vector<1x32xf32>
    %141 = vector.broadcast %139 : vector<128x1xf32> to vector<128x32xf32>
    %142 = vector.broadcast %140 : vector<1x32xf32> to vector<128x32xf32>
    %143 = arith.mulf %141, %142 : vector<128x32xf32>
    %144 = vector.extract_strided_slice %83 {offsets = [0, 1], sizes = [128, 1], strides = [1, 1]} : vector<128x3xf32> to vector<128x1xf32>
    %145 = vector.extract_strided_slice %7 {offsets = [1, 0], sizes = [1, 32], strides = [1, 1]} : vector<3x32xf32> to vector<1x32xf32>
    %146 = vector.broadcast %144 : vector<128x1xf32> to vector<128x32xf32>
    %147 = vector.broadcast %145 : vector<1x32xf32> to vector<128x32xf32>
    %148 = arith.mulf %146, %147 : vector<128x32xf32>
    %149 = arith.addf %143, %148 : vector<128x32xf32>
    %150 = vector.extract_strided_slice %83 {offsets = [0, 2], sizes = [128, 1], strides = [1, 1]} : vector<128x3xf32> to vector<128x1xf32>
    %151 = vector.extract_strided_slice %7 {offsets = [2, 0], sizes = [1, 32], strides = [1, 1]} : vector<3x32xf32> to vector<1x32xf32>
    %152 = vector.broadcast %150 : vector<128x1xf32> to vector<128x32xf32>
    %153 = vector.broadcast %151 : vector<1x32xf32> to vector<128x32xf32>
    %154 = arith.mulf %152, %153 : vector<128x32xf32>
    %155 = arith.addf %149, %154 : vector<128x32xf32>
    %156 = vector.shape_cast %138 : vector<2x32xf32> to vector<2x1x32xf32>
    %157 = vector.shape_cast %156 : vector<2x1x32xf32> to vector<2x1x32xf32>
    %158 = vector.broadcast %157 : vector<2x1x32xf32> to vector<2x64x32xf32>
    %159 = vector.shape_cast %158 : vector<2x64x32xf32> to vector<128x32xf32>
    %160 = arith.addf %155, %159 : vector<128x32xf32>
    %161 = vector.broadcast %15 : vector<1x32xf32> to vector<128x32xf32>
    %162 = arith.addf %160, %161 : vector<128x32xf32>
    %cst_36 = arith.constant 0.000000e+00 : f32
    %163 = vector.broadcast %cst_36 : f32 to vector<128x32xf32>
    %164 = arith.maximumf %162, %163 : vector<128x32xf32>
    %cst_37 = arith.constant dense<0.000000e+00> : vector<128x3xf32>
    %165 = tpu.matmul %164, %17, %cst_37 {dimension_numbers = #tpu.dot_dimension_numbers<[1], [0], [0], [1], [0, 0, 1, 1], [], []>} : vector<128x32xf32>, vector<32x3xf32>, vector<128x3xf32> -> vector<128x3xf32>
    %166 = arith.addf %83, %165 : vector<128x3xf32>
    %167 = vector.broadcast %19 : vector<1x3xf32> to vector<128x3xf32>
    %168 = arith.addf %166, %167 : vector<128x3xf32>
    %c0_38 = arith.constant 0 : index
    %c0_39 = arith.constant 0 : index
    %169 = vector.load %arg5[%c0_38, %c0_39] : memref<128x3xf32, #tpu.memory_space<vmem>>, vector<128x3xf32>
    tpu.vector_store %arg5[%c0_38, %c0_39], %168 {strides = array<i32>} : memref<128x3xf32, #tpu.memory_space<vmem>>, vector<128x3xf32>,
    return
  }
}

</mosaic_0001>

<llo_original>
// kernel: flow_arbitrary.1
$region0: #{flow_arbitrary.1}
  #allocation0 [shape = 'u32[]', space=smem, size = 0x4, offset = 0x4, fixed_abs, tag = 'smem constant byte address 0x4 - core index']
  #allocation1 [shape = 'u32[144,128]{1,0:T(1,128)}', space=vmem, size = 0x12000, scoped, tag = 'internal scratch']
  %s0 = inlined_call_operand.vmem [shape: f32[256,3], index: 0, kind: input, shape index: {}]
  %s1 = inlined_call_operand.vmem [shape: f32[128,4], index: 1, kind: input, shape index: {}]
  %s2 = inlined_call_operand.vmem [shape: f32[160,32], index: 2, kind: input, shape index: {}]
  %s3 = inlined_call_operand.vmem [shape: f32[48,32], index: 3, kind: input, shape index: {}]
  %s4 = inlined_call_operand.vmem [shape: f32[80,3], index: 4, kind: input, shape index: {}]
  %s5 = inlined_call_operand.vmem [shape: f32[128,3], index: 5, kind: output, shape index: {}]
  %s6 = sld [smem:[#allocation0]]
  $region30: #{flow_arbitrary.1} parent=0
    _
  %s8 = ssub.s32 1, %s6
  %s9 = scalar_select 0, %s8, %s6
  // Predicated region
  $region2: #{flow_arbitrary.1} parent=0 // pred_check
    _
  $region3: #{flow_arbitrary.1} parent=0 // pred_check_branch
    %11 = sbr.rel (0) target = $region5
  $region4: #{flow_arbitrary.1} parent=0 // pred_region
    _
  $region5: #{flow_arbitrary.1} parent=0 // pred_fallthru
    _
  // Predicated region
  $region6: #{flow_arbitrary.1} parent=0 // pred_check
    _
  $region7: #{flow_arbitrary.1} parent=0 // pred_check_branch
    %13 = sbr.rel (0) target = $region9
  $region8: #{flow_arbitrary.1} parent=0 // pred_region
    _
  $region9: #{flow_arbitrary.1} parent=0 // pred_fallthru
    _
  // Predicated region
  $region10: #{flow_arbitrary.1} parent=0 // pred_check
    _
  $region11: #{flow_arbitrary.1} parent=0 // pred_check_branch
    %15 = sbr.rel (0) target = $region13
  $region12: #{flow_arbitrary.1} parent=0 // pred_region
    _
  $region13: #{flow_arbitrary.1} parent=0 // pred_fallthru
    _
  // Predicated region
  $region14: #{flow_arbitrary.1} parent=0 // pred_check
    _
  $region15: #{flow_arbitrary.1} parent=0 // pred_check_branch
    %17 = sbr.rel (0) target = $region17
  $region16: #{flow_arbitrary.1} parent=0 // pred_region
    _
  $region17: #{flow_arbitrary.1} parent=0 // pred_fallthru
    _
  // Predicated region
  $region18: #{flow_arbitrary.1} parent=0 // pred_check
    _
  $region19: #{flow_arbitrary.1} parent=0 // pred_check_branch
    %19 = sbr.rel (0) target = $region21
  $region20: #{flow_arbitrary.1} parent=0 // pred_region
    _
  $region21: #{flow_arbitrary.1} parent=0 // pred_fallthru
    _
  %v20 = vld [vmem:[%s0] sm:$0xff]
  %v21 = vld [vmem:[%s0 + $0x8] sm:$0xff]
  %v22 = vld [vmem:[%s0 + $0x10] sm:$0xff]
  %v23 = vld [vmem:[%s0 + $0x18] sm:$0xff]
  %v24 = vld [vmem:[%s0 + $0x20] sm:$0xff]
  %v25 = vld [vmem:[%s0 + $0x28] sm:$0xff]
  %v26 = vld [vmem:[%s0 + $0x30] sm:$0xff]
  %v27 = vld [vmem:[%s0 + $0x38] sm:$0xff]
  %v28 = vld [vmem:[%s0 + $0x40] sm:$0xff]
  %v29 = vld [vmem:[%s0 + $0x48] sm:$0xff]
  %v30 = vld [vmem:[%s0 + $0x50] sm:$0xff]
  %v31 = vld [vmem:[%s0 + $0x58] sm:$0xff]
  %v32 = vld [vmem:[%s0 + $0x60] sm:$0xff]
  %v33 = vld [vmem:[%s0 + $0x68] sm:$0xff]
  %v34 = vld [vmem:[%s0 + $0x70] sm:$0xff]
  %v35 = vld [vmem:[%s0 + $0x78] sm:$0xff]
  %v36 = vld [vmem:[%s0 + $0x80] sm:$0xff]
  %v37 = vld [vmem:[%s0 + $0x88] sm:$0xff]
  %v38 = vld [vmem:[%s0 + $0x90] sm:$0xff]
  %v39 = vld [vmem:[%s0 + $0x98] sm:$0xff]
  %v40 = vld [vmem:[%s0 + $0xa0] sm:$0xff]
  %v41 = vld [vmem:[%s0 + $0xa8] sm:$0xff]
  %v42 = vld [vmem:[%s0 + $0xb0] sm:$0xff]
  %v43 = vld [vmem:[%s0 + $0xb8] sm:$0xff]
  %v44 = vld [vmem:[%s0 + $0xc0] sm:$0xff]
  %v45 = vld [vmem:[%s0 + $0xc8] sm:$0xff]
  %v46 = vld [vmem:[%s0 + $0xd0] sm:$0xff]
  %v47 = vld [vmem:[%s0 + $0xd8] sm:$0xff]
  %v48 = vld [vmem:[%s0 + $0xe0] sm:$0xff]
  %v49 = vld [vmem:[%s0 + $0xe8] sm:$0xff]
  %v50 = vld [vmem:[%s0 + $0xf0] sm:$0xff]
  %v51 = vld [vmem:[%s0 + $0xf8] sm:$0xff]
  %v52 = vld [vmem:[%s1] sm:$0xff]
  %v53 = vld [vmem:[%s1 + $0x8] sm:$0xff]
  %v54 = vld [vmem:[%s1 + $0x10] sm:$0xff]
  %v55 = vld [vmem:[%s1 + $0x18] sm:$0xff]
  %v56 = vld [vmem:[%s1 + $0x20] sm:$0xff]
  %v57 = vld [vmem:[%s1 + $0x28] sm:$0xff]
  %v58 = vld [vmem:[%s1 + $0x30] sm:$0xff]
  %v59 = vld [vmem:[%s1 + $0x38] sm:$0xff]
  %v60 = vld [vmem:[%s1 + $0x40] sm:$0xff]
  %v61 = vld [vmem:[%s1 + $0x48] sm:$0xff]
  %v62 = vld [vmem:[%s1 + $0x50] sm:$0xff]
  %v63 = vld [vmem:[%s1 + $0x58] sm:$0xff]
  %v64 = vld [vmem:[%s1 + $0x60] sm:$0xff]
  %v65 = vld [vmem:[%s1 + $0x68] sm:$0xff]
  %v66 = vld [vmem:[%s1 + $0x70] sm:$0xff]
  %v67 = vld [vmem:[%s1 + $0x78] sm:$0xff]
  %v68 = vld [vmem:[%s2] sm:$0x7]
  %v69 = vld [vmem:[%s2 + $0x8] sm:$0x7]
  %v70 = vld [vmem:[%s2 + $0x10] sm:$0xff]
  %v71 = vld [vmem:[%s2 + $0x18] sm:$0xff]
  %v72 = vld [vmem:[%s2 + $0x20] sm:$0xff]
  %v73 = vld [vmem:[%s2 + $0x28] sm:$0xff]
  %v74 = vld [vmem:[%s2 + $0x30] sm:$0xff]
  %v75 = vld [vmem:[%s2 + $0x38] sm:$0xff]
  %v76 = vld [vmem:[%s2 + $0x40] sm:$0xff]
  %v77 = vld [vmem:[%s2 + $0x48] sm:$0xff]
  %v78 = vld [vmem:[%s2 + $0x50] sm:$0x7f]
  %v79 = vld [vmem:[%s2 + $0x58] sm:$0x7]
  %v80 = vld [vmem:[%s2 + $0x60] sm:$0xff]
  %v81 = vld [vmem:[%s2 + $0x68] sm:$0xff]
  %v82 = vld [vmem:[%s2 + $0x70] sm:$0xff]
  %v83 = vld [vmem:[%s2 + $0x78] sm:$0xff]
  %v84 = vld [vmem:[%s2 + $0x80] sm:$0xff]
  %v85 = vld [vmem:[%s2 + $0x88] sm:$0xff]
  %v86 = vld [vmem:[%s2 + $0x90] sm:$0xff]
  %v87 = vld [vmem:[%s2 + $0x98] sm:$0xff]
  %v88 = vld [vmem:[%s3] sm:$0x1]
  %v89 = vld [vmem:[%s3 + $0x8] sm:$0x1]
  %v90 = vld [vmem:[%s3 + $0x10] sm:$0x1]
  %v91 = vld [vmem:[%s3 + $0x18] sm:$0x1]
  %v92 = vld [vmem:[%s3 + $0x20] sm:$0x1]
  %v93 = vld [vmem:[%s3 + $0x28] sm:$0x1]
  %v94 = vld [vmem:[%s4] sm:$0xff]
  %v95 = vld [vmem:[%s4 + $0x8] sm:$0xff]
  %v96 = vld [vmem:[%s4 + $0x10] sm:$0xff]
  %v97 = vld [vmem:[%s4 + $0x18] sm:$0xff]
  %v98 = vld [vmem:[%s4 + $0x20] sm:$0xff]
  %v99 = vld [vmem:[%s4 + $0x28] sm:$0xff]
  %v100 = vld [vmem:[%s4 + $0x30] sm:$0xff]
  %v101 = vld [vmem:[%s4 + $0x38] sm:$0xff]
  %v102 = vld [vmem:[%s4 + $0x40] sm:$0x1]
  %v103 = vld [vmem:[%s4 + $0x48] sm:$0x1]
  %105 = vset.pattern.permute.xlu0 0
  %106 = vperm.xlu0 %105, %v36
  %v107 = vpop.permute.xlu0 %106
  %110 = vset.pattern.permute.xlu0 0
  %111 = vperm.xlu0 %110, %v37
  %v112 = vpop.permute.xlu0 %111
  %115 = vset.pattern.permute.xlu0 0
  %116 = vperm.xlu0 %115, %v38
  %v117 = vpop.permute.xlu0 %116
  %120 = vset.pattern.permute.xlu0 0
  %121 = vperm.xlu0 %120, %v39
  %v122 = vpop.permute.xlu0 %121
  %125 = vset.pattern.permute.xlu0 0
  %126 = vperm.xlu0 %125, %v40
  %v127 = vpop.permute.xlu0 %126
  %130 = vset.pattern.permute.xlu0 0
  %131 = vperm.xlu0 %130, %v41
  %v132 = vpop.permute.xlu0 %131
  %135 = vset.pattern.permute.xlu0 0
  %136 = vperm.xlu0 %135, %v42
  %v137 = vpop.permute.xlu0 %136
  %140 = vset.pattern.permute.xlu0 0
  %141 = vperm.xlu0 %140, %v43
  %v142 = vpop.permute.xlu0 %141
  %145 = vset.pattern.permute.xlu0 0
  %146 = vperm.xlu0 %145, %v44
  %v147 = vpop.permute.xlu0 %146
  %150 = vset.pattern.permute.xlu0 0
  %151 = vperm.xlu0 %150, %v45
  %v152 = vpop.permute.xlu0 %151
  %155 = vset.pattern.permute.xlu0 0
  %156 = vperm.xlu0 %155, %v46
  %v157 = vpop.permute.xlu0 %156
  %160 = vset.pattern.permute.xlu0 0
  %161 = vperm.xlu0 %160, %v47
  %v162 = vpop.permute.xlu0 %161
  %165 = vset.pattern.permute.xlu0 0
  %166 = vperm.xlu0 %165, %v48
  %v167 = vpop.permute.xlu0 %166
  %170 = vset.pattern.permute.xlu0 0
  %171 = vperm.xlu0 %170, %v49
  %v172 = vpop.permute.xlu0 %171
  %175 = vset.pattern.permute.xlu0 0
  %176 = vperm.xlu0 %175, %v50
  %v177 = vpop.permute.xlu0 %176
  %180 = vset.pattern.permute.xlu0 0
  %181 = vperm.xlu0 %180, %v51
  %v182 = vpop.permute.xlu0 %181
  %v184 = vlaneseq
  %v185 = vshrl.u32 %v184, 7
  %v186 = vsub.s32 0, %v185
  %v187 = vrot.slane %v68, %v186
  %v188 = vmul.f32 %v107, %v187
  %v189 = vmul.f32 %v112, %v187
  %v190 = vmul.f32 %v117, %v187
  %v191 = vmul.f32 %v122, %v187
  %v192 = vmul.f32 %v127, %v187
  %v193 = vmul.f32 %v132, %v187
  %v194 = vmul.f32 %v137, %v187
  %v195 = vmul.f32 %v142, %v187
  %v196 = vmul.f32 %v147, %v187
  %v197 = vmul.f32 %v152, %v187
  %v198 = vmul.f32 %v157, %v187
  %v199 = vmul.f32 %v162, %v187
  %v200 = vmul.f32 %v167, %v187
  %v201 = vmul.f32 %v172, %v187
  %v202 = vmul.f32 %v177, %v187
  %v203 = vmul.f32 %v182, %v187
  %204 = vset.pattern.permute.xlu0 1
  %205 = vperm.xlu0 %204, %v36
  %v206 = vpop.permute.xlu0 %205
  %208 = vset.pattern.permute.xlu0 1
  %209 = vperm.xlu0 %208, %v37
  %v210 = vpop.permute.xlu0 %209
  %212 = vset.pattern.permute.xlu0 1
  %213 = vperm.xlu0 %212, %v38
  %v214 = vpop.permute.xlu0 %213
  %216 = vset.pattern.permute.xlu0 1
  %217 = vperm.xlu0 %216, %v39
  %v218 = vpop.permute.xlu0 %217
  %220 = vset.pattern.permute.xlu0 1
  %221 = vperm.xlu0 %220, %v40
  %v222 = vpop.permute.xlu0 %221
  %224 = vset.pattern.permute.xlu0 1
  %225 = vperm.xlu0 %224, %v41
  %v226 = vpop.permute.xlu0 %225
  %228 = vset.pattern.permute.xlu0 1
  %229 = vperm.xlu0 %228, %v42
  %v230 = vpop.permute.xlu0 %229
  %232 = vset.pattern.permute.xlu0 1
  %233 = vperm.xlu0 %232, %v43
  %v234 = vpop.permute.xlu0 %233
  %236 = vset.pattern.permute.xlu0 1
  %237 = vperm.xlu0 %236, %v44
  %v238 = vpop.permute.xlu0 %237
  %240 = vset.pattern.permute.xlu0 1
  %241 = vperm.xlu0 %240, %v45
  %v242 = vpop.permute.xlu0 %241
  %244 = vset.pattern.permute.xlu0 1
  %245 = vperm.xlu0 %244, %v46
  %v246 = vpop.permute.xlu0 %245
  %248 = vset.pattern.permute.xlu0 1
  %249 = vperm.xlu0 %248, %v47
  %v250 = vpop.permute.xlu0 %249
  %252 = vset.pattern.permute.xlu0 1
  %253 = vperm.xlu0 %252, %v48
  %v254 = vpop.permute.xlu0 %253
  %256 = vset.pattern.permute.xlu0 1
  %257 = vperm.xlu0 %256, %v49
  %v258 = vpop.permute.xlu0 %257
  %260 = vset.pattern.permute.xlu0 1
  %261 = vperm.xlu0 %260, %v50
  %v262 = vpop.permute.xlu0 %261
  %264 = vset.pattern.permute.xlu0 1
  %265 = vperm.xlu0 %264, %v51
  %v266 = vpop.permute.xlu0 %265
  %v268 = vlaneseq
  %v269 = vshrl.u32 %v268, 7
  %v270 = vsub.s32 1, %v269
  %v271 = vrot.slane %v68, %v270
  %v272 = vmul.f32 %v206, %v271
  %v273 = vmul.f32 %v210, %v271
  %v274 = vmul.f32 %v214, %v271
  %v275 = vmul.f32 %v218, %v271
  %v276 = vmul.f32 %v222, %v271
  %v277 = vmul.f32 %v226, %v271
  %v278 = vmul.f32 %v230, %v271
  %v279 = vmul.f32 %v234, %v271
  %v280 = vmul.f32 %v238, %v271
  %v281 = vmul.f32 %v242, %v271
  %v282 = vmul.f32 %v246, %v271
  %v283 = vmul.f32 %v250, %v271
  %v284 = vmul.f32 %v254, %v271
  %v285 = vmul.f32 %v258, %v271
  %v286 = vmul.f32 %v262, %v271
  %v287 = vmul.f32 %v266, %v271
  %v288 = vadd.f32 %v188, %v272
  %v289 = vadd.f32 %v189, %v273
  %v290 = vadd.f32 %v190, %v274
  %v291 = vadd.f32 %v191, %v275
  %v292 = vadd.f32 %v192, %v276
  %v293 = vadd.f32 %v193, %v277
  %v294 = vadd.f32 %v194, %v278
  %v295 = vadd.f32 %v195, %v279
  %v296 = vadd.f32 %v196, %v280
  %v297 = vadd.f32 %v197, %v281
  %v298 = vadd.f32 %v198, %v282
  %v299 = vadd.f32 %v199, %v283
  %v300 = vadd.f32 %v200, %v284
  %v301 = vadd.f32 %v201, %v285
  %v302 = vadd.f32 %v202, %v286
  %v303 = vadd.f32 %v203, %v287
  %304 = vset.pattern.permute.xlu0 2
  %305 = vperm.xlu0 %304, %v36
  %v306 = vpop.permute.xlu0 %305
  %308 = vset.pattern.permute.xlu0 2
  %309 = vperm.xlu0 %308, %v37
  %v310 = vpop.permute.xlu0 %309
  %312 = vset.pattern.permute.xlu0 2
  %313 = vperm.xlu0 %312, %v38
  %v314 = vpop.permute.xlu0 %313
  %316 = vset.pattern.permute.xlu0 2
  %317 = vperm.xlu0 %316, %v39
  %v318 = vpop.permute.xlu0 %317
  %320 = vset.pattern.permute.xlu0 2
  %321 = vperm.xlu0 %320, %v40
  %v322 = vpop.permute.xlu0 %321
  %324 = vset.pattern.permute.xlu0 2
  %325 = vperm.xlu0 %324, %v41
  %v326 = vpop.permute.xlu0 %325
  %328 = vset.pattern.permute.xlu0 2
  %329 = vperm.xlu0 %328, %v42
  %v330 = vpop.permute.xlu0 %329
  %332 = vset.pattern.permute.xlu0 2
  %333 = vperm.xlu0 %332, %v43
  %v334 = vpop.permute.xlu0 %333
  %336 = vset.pattern.permute.xlu0 2
  %337 = vperm.xlu0 %336, %v44
  %v338 = vpop.permute.xlu0 %337
  %340 = vset.pattern.permute.xlu0 2
  %341 = vperm.xlu0 %340, %v45
  %v342 = vpop.permute.xlu0 %341
  %344 = vset.pattern.permute.xlu0 2
  %345 = vperm.xlu0 %344, %v46
  %v346 = vpop.permute.xlu0 %345
  %348 = vset.pattern.permute.xlu0 2
  %349 = vperm.xlu0 %348, %v47
  %v350 = vpop.permute.xlu0 %349
  %352 = vset.pattern.permute.xlu0 2
  %353 = vperm.xlu0 %352, %v48
  %v354 = vpop.permute.xlu0 %353
  %356 = vset.pattern.permute.xlu0 2
  %357 = vperm.xlu0 %356, %v49
  %v358 = vpop.permute.xlu0 %357
  %360 = vset.pattern.permute.xlu0 2
  %361 = vperm.xlu0 %360, %v50
  %v362 = vpop.permute.xlu0 %361
  %364 = vset.pattern.permute.xlu0 2
  %365 = vperm.xlu0 %364, %v51
  %v366 = vpop.permute.xlu0 %365
  %v368 = vlaneseq
  %v369 = vshrl.u32 %v368, 7
  %v370 = vsub.s32 2, %v369
  %v371 = vrot.slane %v68, %v370
  %v372 = vmul.f32 %v306, %v371
  %v373 = vmul.f32 %v310, %v371
  %v374 = vmul.f32 %v314, %v371
  %v375 = vmul.f32 %v318, %v371
  %v376 = vmul.f32 %v322, %v371
  %v377 = vmul.f32 %v326, %v371
  %v378 = vmul.f32 %v330, %v371
  %v379 = vmul.f32 %v334, %v371
  %v380 = vmul.f32 %v338, %v371
  %v381 = vmul.f32 %v342, %v371
  %v382 = vmul.f32 %v346, %v371
  %v383 = vmul.f32 %v350, %v371
  %v384 = vmul.f32 %v354, %v371
  %v385 = vmul.f32 %v358, %v371
  %v386 = vmul.f32 %v362, %v371
  %v387 = vmul.f32 %v366, %v371
  %v388 = vadd.f32 %v288, %v372
  %v389 = vadd.f32 %v289, %v373
  %v390 = vadd.f32 %v290, %v374
  %v391 = vadd.f32 %v291, %v375
  %v392 = vadd.f32 %v292, %v376
  %v393 = vadd.f32 %v293, %v377
  %v394 = vadd.f32 %v294, %v378
  %v395 = vadd.f32 %v295, %v379
  %v396 = vadd.f32 %v296, %v380
  %v397 = vadd.f32 %v297, %v381
  %v398 = vadd.f32 %v298, %v382
  %v399 = vadd.f32 %v299, %v383
  %v400 = vadd.f32 %v300, %v384
  %v401 = vadd.f32 %v301, %v385
  %v402 = vadd.f32 %v302, %v386
  %v403 = vadd.f32 %v303, %v387
  %v404 = vlaneseq
  %v405 = vshrl.u32 %v404, 7
  %v406 = vsub.s32 0, %v405
  %v407 = vrot.slane %v88, %v406
  %v408 = vadd.f32 %v388, %v407
  %v409 = vadd.f32 %v389, %v407
  %v410 = vadd.f32 %v390, %v407
  %v411 = vadd.f32 %v391, %v407
  %v412 = vadd.f32 %v392, %v407
  %v413 = vadd.f32 %v393, %v407
  %v414 = vadd.f32 %v394, %v407
  %v415 = vadd.f32 %v395, %v407
  %v416 = vadd.f32 %v396, %v407
  %v417 = vadd.f32 %v397, %v407
  %v418 = vadd.f32 %v398, %v407
  %v419 = vadd.f32 %v399, %v407
  %v420 = vadd.f32 %v400, %v407
  %v421 = vadd.f32 %v401, %v407
  %v422 = vadd.f32 %v402, %v407
  %v423 = vadd.f32 %v403, %v407
  %v424 = vmax.f32 %v408, 0.0
  %v425 = vmax.f32 %v409, 0.0
  %v426 = vmax.f32 %v410, 0.0
  %v427 = vmax.f32 %v411, 0.0
  %v428 = vmax.f32 %v412, 0.0
  %v429 = vmax.f32 %v413, 0.0
  %v430 = vmax.f32 %v414, 0.0
  %v431 = vmax.f32 %v415, 0.0
  %v432 = vmax.f32 %v416, 0.0
  %v433 = vmax.f32 %v417, 0.0
  %v434 = vmax.f32 %v418, 0.0
  %v435 = vmax.f32 %v419, 0.0
  %v436 = vmax.f32 %v420, 0.0
  %v437 = vmax.f32 %v421, 0.0
  %v438 = vmax.f32 %v422, 0.0
  %v439 = vmax.f32 %v423, 0.0
  %v440 = vlaneseq
  %v441 = vshrl.u32 %v440, 7
  %v442 = vsub.s32 0, %v441
  %v443 = vrot.slane %v89, %v442
  %vm444 = vcmask 261120
  %v446 = vsel %vm444, %v424, 0
  %v449 = vsel %vm444, %v425, 0
  %v452 = vsel %vm444, %v426, 0
  %v455 = vsel %vm444, %v427, 0
  %v458 = vsel %vm444, %v428, 0
  %v461 = vsel %vm444, %v429, 0
  %v464 = vsel %vm444, %v430, 0
  %v467 = vsel %vm444, %v431, 0
  %v470 = vsel %vm444, %v432, 0
  %v473 = vsel %vm444, %v433, 0
  %v476 = vsel %vm444, %v434, 0
  %v479 = vsel %vm444, %v435, 0
  %v482 = vsel %vm444, %v436, 0
  %v485 = vsel %vm444, %v437, 0
  %v488 = vsel %vm444, %v438, 0
  %v491 = vsel %vm444, %v439, 0
  %493 = vmatprep.subr.mxu0 0.0
  %494 = vmatpush1.msra.mxu0 %v70
  %495 = vmatprep.subr.mxu0 0.0
  %496 = vmatpush1.msra.mxu0 %v71
  %497 = vmatprep.subr.mxu0 0.0
  %498 = vmatpush1.msra.mxu0 %v72
  %499 = vmatprep.subr.mxu0 0.0
  %500 = vmatpush1.msra.mxu0 %v73
  %501 = vmatprep.subr.mxu0 0.0
  %502 = vmatpush1.msra.mxu0 0.0
  %503 = vmatprep.subr.mxu0 0.0
  %504 = vmatpush1.msra.mxu0 0.0
  %505 = vmatprep.subr.mxu0 0.0
  %506 = vmatpush1.msra.mxu0 0.0
  %507 = vmatprep.subr.mxu0 0.0
  %508 = vmatpush1.msra.mxu0 0.0
  %509 = vmatprep.subr.mxu0 0.0
  %510 = vmatpush1.msra.mxu0 0.0
  %511 = vmatprep.subr.mxu0 0.0
  %512 = vmatpush1.msra.mxu0 0.0
  %513 = vmatprep.subr.mxu0 0.0
  %514 = vmatpush1.msra.mxu0 0.0
  %515 = vmatprep.subr.mxu0 0.0
  %516 = vmatpush1.msra.mxu0 0.0
  %517 = vmatprep.subr.mxu0 0.0
  %518 = vmatpush1.msra.mxu0 0.0
  %519 = vmatprep.subr.mxu0 0.0
  %520 = vmatpush1.msra.mxu0 0.0
  %521 = vmatprep.subr.mxu0 0.0
  %522 = vmatpush1.msra.mxu0 0.0
  %523 = vmatprep.subr.mxu0 0.0
  %524 = vmatpush1.msra.mxu0 0.0
  %525 = vmatprep.subr.mxu0 0.0
  %526 = vmatpush1.msra.mxu0 0.0
  %527 = vmatprep.subr.mxu0 0.0
  %528 = vmatpush1.msra.mxu0 0.0
  %529 = vmatprep.subr.mxu0 0.0
  %530 = vmatpush1.msra.mxu0 0.0
  %531 = vmatprep.subr.mxu0 0.0
  %532 = vmatpush1.msra.mxu0 0.0
  %533 = vmatprep.subr.mxu0 0.0
  %534 = vmatpush1.msra.mxu0 0.0
  %535 = vmatprep.subr.mxu0 0.0
  %536 = vmatpush1.msra.mxu0 0.0
  %537 = vmatprep.subr.mxu0 0.0
  %538 = vmatpush1.msra.mxu0 0.0
  %539 = vmatprep.subr.mxu0 0.0
  %540 = vmatpush1.msra.mxu0 0.0
  %541 = vmatprep.subr.mxu0 0.0
  %542 = vmatpush1.msra.mxu0 0.0
  %543 = vmatprep.subr.mxu0 0.0
  %544 = vmatpush1.msra.mxu0 0.0
  %545 = vmatprep.subr.mxu0 0.0
  %546 = vmatpush1.msra.mxu0 0.0
  %547 = vmatprep.subr.mxu0 0.0
  %548 = vmatpush1.msra.mxu0 0.0
  %549 = vmatprep.subr.mxu0 0.0
  %550 = vmatpush1.msra.mxu0 0.0
  %551 = vmatprep.subr.mxu0 0.0
  %552 = vmatpush1.msra.mxu0 0.0
  %553 = vmatprep.subr.mxu0 0.0
  %554 = vmatpush1.msra.mxu0 0.0
  %555 = vmatprep.subr.mxu0 0.0
  %556 = vmatpush1.msra.mxu0 0.0
  %557 = vmatprep.mubr.f32.mxu0 0.0
  %558 = vmatmul.mubr.f32.gmra.mrb[0].mxu0 %v446
  %v559 = vpop.f32.mrb[0].mxu0
  %v560 = vadd.f32 %v443, %v559
  %v561 = vpop.f32.mrb[0].mxu0
  %562 = vmatprep.mubr.f32.mxu0 0.0
  %563 = vmatmul.mubr.f32.gmra.mrb[0].mxu0 %v449
  %v564 = vpop.f32.mrb[0].mxu0
  %v565 = vadd.f32 %v443, %v564
  %v566 = vpop.f32.mrb[0].mxu0
  %567 = vmatprep.mubr.f32.mxu0 0.0
  %568 = vmatmul.mubr.f32.gmra.mrb[0].mxu0 %v452
  %v569 = vpop.f32.mrb[0].mxu0
  %v570 = vadd.f32 %v443, %v569
  %v571 = vpop.f32.mrb[0].mxu0
  %572 = vmatprep.mubr.f32.mxu0 0.0
  %573 = vmatmul.mubr.f32.gmra.mrb[0].mxu0 %v455
  %v574 = vpop.f32.mrb[0].mxu0
  %v575 = vadd.f32 %v443, %v574
  %v576 = vpop.f32.mrb[0].mxu0
  %577 = vmatprep.mubr.f32.mxu0 0.0
  %578 = vmatmul.mubr.f32.gmra.mrb[0].mxu0 %v458
  %v579 = vpop.f32.mrb[0].mxu0
  %v580 = vadd.f32 %v443, %v579
  %v581 = vpop.f32.mrb[0].mxu0
  %582 = vmatprep.mubr.f32.mxu0 0.0
  %583 = vmatmul.mubr.f32.gmra.mrb[0].mxu0 %v461
  %v584 = vpop.f32.mrb[0].mxu0
  %v585 = vadd.f32 %v443, %v584
  %v586 = vpop.f32.mrb[0].mxu0
  %587 = vmatprep.mubr.f32.mxu0 0.0
  %588 = vmatmul.mubr.f32.gmra.mrb[0].mxu0 %v464
  %v589 = vpop.f32.mrb[0].mxu0
  %v590 = vadd.f32 %v443, %v589
  %v591 = vpop.f32.mrb[0].mxu0
  %592 = vmatprep.mubr.f32.mxu0 0.0
  %593 = vmatmul.mubr.f32.gmra.mrb[0].mxu0 %v467
  %v594 = vpop.f32.mrb[0].mxu0
  %v595 = vadd.f32 %v443, %v594
  %v596 = vpop.f32.mrb[0].mxu0
  %597 = vmatprep.mubr.f32.mxu0 0.0
  %598 = vmatmul.mubr.f32.gmra.mrb[0].mxu0 %v470
  %v599 = vpop.f32.mrb[0].mxu0
  %v600 = vadd.f32 %v443, %v599
  %v601 = vpop.f32.mrb[0].mxu0
  %602 = vmatprep.mubr.f32.mxu0 0.0
  %603 = vmatmul.mubr.f32.gmra.mrb[0].mxu0 %v473
  %v604 = vpop.f32.mrb[0].mxu0
  %v605 = vadd.f32 %v443, %v604
  %v606 = vpop.f32.mrb[0].mxu0
  %607 = vmatprep.mubr.f32.mxu0 0.0
  %608 = vmatmul.mubr.f32.gmra.mrb[0].mxu0 %v476
  %v609 = vpop.f32.mrb[0].mxu0
  %v610 = vadd.f32 %v443, %v609
  %v611 = vpop.f32.mrb[0].mxu0
  %612 = vmatprep.mubr.f32.mxu0 0.0
  %613 = vmatmul.mubr.f32.gmra.mrb[0].mxu0 %v479
  %v614 = vpop.f32.mrb[0].mxu0
  %v615 = vadd.f32 %v443, %v614
  %v616 = vpop.f32.mrb[0].mxu0
  %617 = vmatprep.mubr.f32.mxu0 0.0
  %618 = vmatmul.mubr.f32.gmra.mrb[0].mxu0 %v482
  %v619 = vpop.f32.mrb[0].mxu0
  %v620 = vadd.f32 %v443, %v619
  %v621 = vpop.f32.mrb[0].mxu0
  %622 = vmatprep.mubr.f32.mxu0 0.0
  %623 = vmatmul.mubr.f32.gmra.mrb[0].mxu0 %v485
  %v624 = vpop.f32.mrb[0].mxu0
  %v625 = vadd.f32 %v443, %v624
  %v626 = vpop.f32.mrb[0].mxu0
  %627 = vmatprep.mubr.f32.mxu0 0.0
  %628 = vmatmul.mubr.f32.gmra.mrb[0].mxu0 %v488
  %v629 = vpop.f32.mrb[0].mxu0
  %v630 = vadd.f32 %v443, %v629
  %v631 = vpop.f32.mrb[0].mxu0
  %632 = vmatprep.mubr.f32.mxu0 0.0
  %633 = vmatmul.mubr.f32.gmra.mrb[0].mxu0 %v491
  %v634 = vpop.f32.mrb[0].mxu0
  %v635 = vadd.f32 %v443, %v634
  %v636 = vpop.f32.mrb[0].mxu0
  %637 = vdwg.mxu0
  %v638 = vsel %vm444, %v560, -inf
  %v639 = vsel %vm444, %v565, -inf
  %v640 = vsel %vm444, %v570, -inf
  %v641 = vmax.f32 %v638, %v640
  %v642 = vsel %vm444, %v575, -inf
  %v643 = vmax.f32 %v639, %v642
  %v644 = vsel %vm444, %v580, -inf
  %v645 = vmax.f32 %v641, %v644
  %v646 = vsel %vm444, %v585, -inf
  %v647 = vmax.f32 %v643, %v646
  %v648 = vsel %vm444, %v590, -inf
  %v649 = vmax.f32 %v645, %v648
  %v650 = vsel %vm444, %v595, -inf
  %v651 = vmax.f32 %v647, %v650
  %v652 = vmax.f32 %v649, %v651
  %v653 = vrot.slane %v652, 4
  %v654 = vmax.f32 %v652, %v653
  %v655 = vrot.slane %v654, 2
  %v656 = vmax.f32 %v654, %v655
  %v657 = vrot.slane %v656, 1
  %v658 = vmax.f32 %v656, %v657
  %v659 = vsel %vm444, %v600, -inf
  %v660 = vsel %vm444, %v605, -inf
  %v661 = vsel %vm444, %v610, -inf
  %v662 = vmax.f32 %v659, %v661
  %v663 = vsel %vm444, %v615, -inf
  %v664 = vmax.f32 %v660, %v663
  %v665 = vsel %vm444, %v620, -inf
  %v666 = vmax.f32 %v662, %v665
  %v667 = vsel %vm444, %v625, -inf
  %v668 = vmax.f32 %v664, %v667
  %v669 = vsel %vm444, %v630, -inf
  %v670 = vmax.f32 %v666, %v669
  %v671 = vsel %vm444, %v635, -inf
  %v672 = vmax.f32 %v668, %v671
  %v673 = vmax.f32 %v670, %v672
  %v674 = vrot.slane %v673, 4
  %v675 = vmax.f32 %v673, %v674
  %v676 = vrot.slane %v675, 2
  %v677 = vmax.f32 %v675, %v676
  %v678 = vrot.slane %v677, 1
  %v679 = vmax.f32 %v677, %v678
  %vm682 = vcmask 1041409
  %v683 = vsel %vm682, %v679, %v658
  %v684 = vsel %vm444, %v683, 0
  %686 = vmatprep.subr.mxu0 0.0
  %687 = vmatpush1.msra.mxu0 %v74
  %688 = vmatprep.subr.mxu0 0.0
  %689 = vmatpush1.msra.mxu0 %v75
  %690 = vmatprep.subr.mxu0 0.0
  %691 = vmatpush1.msra.mxu0 %v76
  %692 = vmatprep.subr.mxu0 0.0
  %693 = vmatpush1.msra.mxu0 %v77
  %694 = vmatprep.subr.mxu0 0.0
  %695 = vmatpush1.msra.mxu0 0.0
  %696 = vmatprep.subr.mxu0 0.0
  %697 = vmatpush1.msra.mxu0 0.0
  %698 = vmatprep.subr.mxu0 0.0
  %699 = vmatpush1.msra.mxu0 0.0
  %700 = vmatprep.subr.mxu0 0.0
  %701 = vmatpush1.msra.mxu0 0.0
  %702 = vmatprep.subr.mxu0 0.0
  %703 = vmatpush1.msra.mxu0 0.0
  %704 = vmatprep.subr.mxu0 0.0
  %705 = vmatpush1.msra.mxu0 0.0
  %706 = vmatprep.subr.mxu0 0.0
  %707 = vmatpush1.msra.mxu0 0.0
  %708 = vmatprep.subr.mxu0 0.0
  %709 = vmatpush1.msra.mxu0 0.0
  %710 = vmatprep.subr.mxu0 0.0
  %711 = vmatpush1.msra.mxu0 0.0
  %712 = vmatprep.subr.mxu0 0.0
  %713 = vmatpush1.msra.mxu0 0.0
  %714 = vmatprep.subr.mxu0 0.0
  %715 = vmatpush1.msra.mxu0 0.0
  %716 = vmatprep.subr.mxu0 0.0
  %717 = vmatpush1.msra.mxu0 0.0
  %718 = vmatprep.subr.mxu0 0.0
  %719 = vmatpush1.msra.mxu0 0.0
  %720 = vmatprep.subr.mxu0 0.0
  %721 = vmatpush1.msra.mxu0 0.0
  %722 = vmatprep.subr.mxu0 0.0
  %723 = vmatpush1.msra.mxu0 0.0
  %724 = vmatprep.subr.mxu0 0.0
  %725 = vmatpush1.msra.mxu0 0.0
  %726 = vmatprep.subr.mxu0 0.0
  %727 = vmatpush1.msra.mxu0 0.0
  %728 = vmatprep.subr.mxu0 0.0
  %729 = vmatpush1.msra.mxu0 0.0
  %730 = vmatprep.subr.mxu0 0.0
  %731 = vmatpush1.msra.mxu0 0.0
  %732 = vmatprep.subr.mxu0 0.0
  %733 = vmatpush1.msra.mxu0 0.0
  %734 = vmatprep.subr.mxu0 0.0
  %735 = vmatpush1.msra.mxu0 0.0
  %736 = vmatprep.subr.mxu0 0.0
  %737 = vmatpush1.msra.mxu0 0.0
  %738 = vmatprep.subr.mxu0 0.0
  %739 = vmatpush1.msra.mxu0 0.0
  %740 = vmatprep.subr.mxu0 0.0
  %741 = vmatpush1.msra.mxu0 0.0
  %742 = vmatprep.subr.mxu0 0.0
  %743 = vmatpush1.msra.mxu0 0.0
  %744 = vmatprep.subr.mxu0 0.0
  %745 = vmatpush1.msra.mxu0 0.0
  %746 = vmatprep.subr.mxu0 0.0
  %747 = vmatpush1.msra.mxu0 0.0
  %748 = vmatprep.subr.mxu0 0.0
  %749 = vmatpush1.msra.mxu0 0.0
  %750 = vmatprep.mubr.f32.mxu0 0.0
  %751 = vmatmul.mubr.f32.gmra.mrb[0].mxu0 %v684
  %v752 = vpop.f32.mrb[0].mxu0
  %v753 = vadd.f32 0.0, %v752
  %v754 = vpop.f32.mrb[0].mxu0
  %755 = vdwg.mxu0
  %v758 = vunpack.c.l.s4 1966171168
  %v759 = vunpack.c.0.s8 %v758
  %v760 = vlaneseq
  %v761 = vshrl.u32 %v760, 7
  %v762 = vsub.s32 %v759, %v761
  %v763 = vrot.slane %v753, %v762
  %v764 = vcombine.high %v763, %v763
  %v766 = vunpack.c.l.s4 1966171168
  %v767 = vunpack.c.0.s8 %v766
  %v768 = vlaneseq
  %v769 = vshrl.u32 %v768, 7
  %v770 = vsub.s32 %v767, %v769
  %v771 = vrot.slane %v763, %v770
  %v773 = vunpack.c.l.s4 1966171168
  %v774 = vunpack.c.0.s8 %v773
  %v775 = vlaneseq
  %v776 = vshrl.u32 %v775, 7
  %v777 = vsub.s32 %v774, %v776
  %v778 = vrot.slane %v764, %v777
  %v779 = vlaneseq
  %v780 = vshrl.u32 %v779, 7
  %v781 = vsub.s32 0, %v780
  %v782 = vrot.slane %v771, %v781
  %v783 = vlaneseq
  %v784 = vshrl.u32 %v783, 7
  %v785 = vsub.s32 0, %v784
  %v786 = vrot.slane %v778, %v785
  %790 = vset.pattern.permute.xlu0 0
  %791 = vperm.xlu0 %790, %v20
  %v792 = vpop.permute.xlu0 %791
  %795 = vset.pattern.permute.xlu0 0
  %796 = vperm.xlu0 %795, %v21
  %v797 = vpop.permute.xlu0 %796
  %800 = vset.pattern.permute.xlu0 0
  %801 = vperm.xlu0 %800, %v22
  %v802 = vpop.permute.xlu0 %801
  %805 = vset.pattern.permute.xlu0 0
  %806 = vperm.xlu0 %805, %v23
  %v807 = vpop.permute.xlu0 %806
  %810 = vset.pattern.permute.xlu0 0
  %811 = vperm.xlu0 %810, %v24
  %v812 = vpop.permute.xlu0 %811
  %815 = vset.pattern.permute.xlu0 0
  %816 = vperm.xlu0 %815, %v25
  %v817 = vpop.permute.xlu0 %816
  %820 = vset.pattern.permute.xlu0 0
  %821 = vperm.xlu0 %820, %v26
  %v822 = vpop.permute.xlu0 %821
  %825 = vset.pattern.permute.xlu0 0
  %826 = vperm.xlu0 %825, %v27
  %v827 = vpop.permute.xlu0 %826
  %830 = vset.pattern.permute.xlu0 0
  %831 = vperm.xlu0 %830, %v28
  %v832 = vpop.permute.xlu0 %831
  %835 = vset.pattern.permute.xlu0 0
  %836 = vperm.xlu0 %835, %v29
  %v837 = vpop.permute.xlu0 %836
  %840 = vset.pattern.permute.xlu0 0
  %841 = vperm.xlu0 %840, %v30
  %v842 = vpop.permute.xlu0 %841
  %845 = vset.pattern.permute.xlu0 0
  %846 = vperm.xlu0 %845, %v31
  %v847 = vpop.permute.xlu0 %846
  %850 = vset.pattern.permute.xlu0 0
  %851 = vperm.xlu0 %850, %v32
  %v852 = vpop.permute.xlu0 %851
  %855 = vset.pattern.permute.xlu0 0
  %856 = vperm.xlu0 %855, %v33
  %v857 = vpop.permute.xlu0 %856
  %860 = vset.pattern.permute.xlu0 0
  %861 = vperm.xlu0 %860, %v34
  %v862 = vpop.permute.xlu0 %861
  %865 = vset.pattern.permute.xlu0 0
  %866 = vperm.xlu0 %865, %v35
  %v867 = vpop.permute.xlu0 %866
  %v869 = vlaneseq
  %v870 = vshrl.u32 %v869, 7
  %v871 = vsub.s32 0, %v870
  %v872 = vrot.slane %v69, %v871
  %v873 = vmul.f32 %v792, %v872
  %v874 = vmul.f32 %v797, %v872
  %v875 = vmul.f32 %v802, %v872
  %v876 = vmul.f32 %v807, %v872
  %v877 = vmul.f32 %v812, %v872
  %v878 = vmul.f32 %v817, %v872
  %v879 = vmul.f32 %v822, %v872
  %v880 = vmul.f32 %v827, %v872
  %v881 = vmul.f32 %v832, %v872
  %v882 = vmul.f32 %v837, %v872
  %v883 = vmul.f32 %v842, %v872
  %v884 = vmul.f32 %v847, %v872
  %v885 = vmul.f32 %v852, %v872
  %v886 = vmul.f32 %v857, %v872
  %v887 = vmul.f32 %v862, %v872
  %v888 = vmul.f32 %v867, %v872
  %v889 = vmul.f32 %v107, %v872
  %v890 = vmul.f32 %v112, %v872
  %v891 = vmul.f32 %v117, %v872
  %v892 = vmul.f32 %v122, %v872
  %v893 = vmul.f32 %v127, %v872
  %v894 = vmul.f32 %v132, %v872
  %v895 = vmul.f32 %v137, %v872
  %v896 = vmul.f32 %v142, %v872
  %v897 = vmul.f32 %v147, %v872
  %v898 = vmul.f32 %v152, %v872
  %v899 = vmul.f32 %v157, %v872
  %v900 = vmul.f32 %v162, %v872
  %v901 = vmul.f32 %v167, %v872
  %v902 = vmul.f32 %v172, %v872
  %v903 = vmul.f32 %v177, %v872
  %v904 = vmul.f32 %v182, %v872
  %905 = vset.pattern.permute.xlu0 1
  %906 = vperm.xlu0 %905, %v20
  %v907 = vpop.permute.xlu0 %906
  %909 = vset.pattern.permute.xlu0 1
  %910 = vperm.xlu0 %909, %v21
  %v911 = vpop.permute.xlu0 %910
  %913 = vset.pattern.permute.xlu0 1
  %914 = vperm.xlu0 %913, %v22
  %v915 = vpop.permute.xlu0 %914
  %917 = vset.pattern.permute.xlu0 1
  %918 = vperm.xlu0 %917, %v23
  %v919 = vpop.permute.xlu0 %918
  %921 = vset.pattern.permute.xlu0 1
  %922 = vperm.xlu0 %921, %v24
  %v923 = vpop.permute.xlu0 %922
  %925 = vset.pattern.permute.xlu0 1
  %926 = vperm.xlu0 %925, %v25
  %v927 = vpop.permute.xlu0 %926
  %929 = vset.pattern.permute.xlu0 1
  %930 = vperm.xlu0 %929, %v26
  %v931 = vpop.permute.xlu0 %930
  %933 = vset.pattern.permute.xlu0 1
  %934 = vperm.xlu0 %933, %v27
  %v935 = vpop.permute.xlu0 %934
  %937 = vset.pattern.permute.xlu0 1
  %938 = vperm.xlu0 %937, %v28
  %v939 = vpop.permute.xlu0 %938
  %941 = vset.pattern.permute.xlu0 1
  %942 = vperm.xlu0 %941, %v29
  %v943 = vpop.permute.xlu0 %942
  %945 = vset.pattern.permute.xlu0 1
  %946 = vperm.xlu0 %945, %v30
  %v947 = vpop.permute.xlu0 %946
  %949 = vset.pattern.permute.xlu0 1
  %950 = vperm.xlu0 %949, %v31
  %v951 = vpop.permute.xlu0 %950
  %953 = vset.pattern.permute.xlu0 1
  %954 = vperm.xlu0 %953, %v32
  %v955 = vpop.permute.xlu0 %954
  %957 = vset.pattern.permute.xlu0 1
  %958 = vperm.xlu0 %957, %v33
  %v959 = vpop.permute.xlu0 %958
  %961 = vset.pattern.permute.xlu0 1
  %962 = vperm.xlu0 %961, %v34
  %v963 = vpop.permute.xlu0 %962
  %965 = vset.pattern.permute.xlu0 1
  %966 = vperm.xlu0 %965, %v35
  %v967 = vpop.permute.xlu0 %966
  %v969 = vlaneseq
  %v970 = vshrl.u32 %v969, 7
  %v971 = vsub.s32 1, %v970
  %v972 = vrot.slane %v69, %v971
  %v973 = vmul.f32 %v907, %v972
  %v974 = vmul.f32 %v911, %v972
  %v975 = vmul.f32 %v915, %v972
  %v976 = vmul.f32 %v919, %v972
  %v977 = vmul.f32 %v923, %v972
  %v978 = vmul.f32 %v927, %v972
  %v979 = vmul.f32 %v931, %v972
  %v980 = vmul.f32 %v935, %v972
  %v981 = vmul.f32 %v939, %v972
  %v982 = vmul.f32 %v943, %v972
  %v983 = vmul.f32 %v947, %v972
  %v984 = vmul.f32 %v951, %v972
  %v985 = vmul.f32 %v955, %v972
  %v986 = vmul.f32 %v959, %v972
  %v987 = vmul.f32 %v963, %v972
  %v988 = vmul.f32 %v967, %v972
  %v989 = vmul.f32 %v206, %v972
  %v990 = vmul.f32 %v210, %v972
  %v991 = vmul.f32 %v214, %v972
  %v992 = vmul.f32 %v218, %v972
  %v993 = vmul.f32 %v222, %v972
  %v994 = vmul.f32 %v226, %v972
  %v995 = vmul.f32 %v230, %v972
  %v996 = vmul.f32 %v234, %v972
  %v997 = vmul.f32 %v238, %v972
  %v998 = vmul.f32 %v242, %v972
  %v999 = vmul.f32 %v246, %v972
  %v1000 = vmul.f32 %v250, %v972
  %v1001 = vmul.f32 %v254, %v972
  %v1002 = vmul.f32 %v258, %v972
  %v1003 = vmul.f32 %v262, %v972
  %v1004 = vmul.f32 %v266, %v972
  %v1005 = vadd.f32 %v873, %v973
  %v1006 = vadd.f32 %v874, %v974
  %v1007 = vadd.f32 %v875, %v975
  %v1008 = vadd.f32 %v876, %v976
  %v1009 = vadd.f32 %v877, %v977
  %v1010 = vadd.f32 %v878, %v978
  %v1011 = vadd.f32 %v879, %v979
  %v1012 = vadd.f32 %v880, %v980
  %v1013 = vadd.f32 %v881, %v981
  %v1014 = vadd.f32 %v882, %v982
  %v1015 = vadd.f32 %v883, %v983
  %v1016 = vadd.f32 %v884, %v984
  %v1017 = vadd.f32 %v885, %v985
  %v1018 = vadd.f32 %v886, %v986
  %v1019 = vadd.f32 %v887, %v987
  %v1020 = vadd.f32 %v888, %v988
  %v1021 = vadd.f32 %v889, %v989
  %v1022 = vadd.f32 %v890, %v990
  %v1023 = vadd.f32 %v891, %v991
  %v1024 = vadd.f32 %v892, %v992
  %v1025 = vadd.f32 %v893, %v993
  %v1026 = vadd.f32 %v894, %v994
  %v1027 = vadd.f32 %v895, %v995
  %v1028 = vadd.f32 %v896, %v996
  %v1029 = vadd.f32 %v897, %v997
  %v1030 = vadd.f32 %v898, %v998
  %v1031 = vadd.f32 %v899, %v999
  %v1032 = vadd.f32 %v900, %v1000
  %v1033 = vadd.f32 %v901, %v1001
  %v1034 = vadd.f32 %v902, %v1002
  %v1035 = vadd.f32 %v903, %v1003
  %v1036 = vadd.f32 %v904, %v1004
  %1037 = vset.pattern.permute.xlu0 2
  %1038 = vperm.xlu0 %1037, %v20
  %v1039 = vpop.permute.xlu0 %1038
  %1041 = vset.pattern.permute.xlu0 2
  %1042 = vperm.xlu0 %1041, %v21
  %v1043 = vpop.permute.xlu0 %1042
  %1045 = vset.pattern.permute.xlu0 2
  %1046 = vperm.xlu0 %1045, %v22
  %v1047 = vpop.permute.xlu0 %1046
  %1049 = vset.pattern.permute.xlu0 2
  %1050 = vperm.xlu0 %1049, %v23
  %v1051 = vpop.permute.xlu0 %1050
  %1053 = vset.pattern.permute.xlu0 2
  %1054 = vperm.xlu0 %1053, %v24
  %v1055 = vpop.permute.xlu0 %1054
  %1057 = vset.pattern.permute.xlu0 2
  %1058 = vperm.xlu0 %1057, %v25
  %v1059 = vpop.permute.xlu0 %1058
  %1061 = vset.pattern.permute.xlu0 2
  %1062 = vperm.xlu0 %1061, %v26
  %v1063 = vpop.permute.xlu0 %1062
  %1065 = vset.pattern.permute.xlu0 2
  %1066 = vperm.xlu0 %1065, %v27
  %v1067 = vpop.permute.xlu0 %1066
  %1069 = vset.pattern.permute.xlu0 2
  %1070 = vperm.xlu0 %1069, %v28
  %v1071 = vpop.permute.xlu0 %1070
  %1073 = vset.pattern.permute.xlu0 2
  %1074 = vperm.xlu0 %1073, %v29
  %v1075 = vpop.permute.xlu0 %1074
  %1077 = vset.pattern.permute.xlu0 2
  %1078 = vperm.xlu0 %1077, %v30
  %v1079 = vpop.permute.xlu0 %1078
  %1081 = vset.pattern.permute.xlu0 2
  %1082 = vperm.xlu0 %1081, %v31
  %v1083 = vpop.permute.xlu0 %1082
  %1085 = vset.pattern.permute.xlu0 2
  %1086 = vperm.xlu0 %1085, %v32
  %v1087 = vpop.permute.xlu0 %1086
  %1089 = vset.pattern.permute.xlu0 2
  %1090 = vperm.xlu0 %1089, %v33
  %v1091 = vpop.permute.xlu0 %1090
  %1093 = vset.pattern.permute.xlu0 2
  %1094 = vperm.xlu0 %1093, %v34
  %v1095 = vpop.permute.xlu0 %1094
  %1097 = vset.pattern.permute.xlu0 2
  %1098 = vperm.xlu0 %1097, %v35
  %v1099 = vpop.permute.xlu0 %1098
  %v1101 = vlaneseq
  %v1102 = vshrl.u32 %v1101, 7
  %v1103 = vsub.s32 2, %v1102
  %v1104 = vrot.slane %v69, %v1103
  %v1105 = vmul.f32 %v1039, %v1104
  %v1106 = vmul.f32 %v1043, %v1104
  %v1107 = vmul.f32 %v1047, %v1104
  %v1108 = vmul.f32 %v1051, %v1104
  %v1109 = vmul.f32 %v1055, %v1104
  %v1110 = vmul.f32 %v1059, %v1104
  %v1111 = vmul.f32 %v1063, %v1104
  %v1112 = vmul.f32 %v1067, %v1104
  %v1113 = vmul.f32 %v1071, %v1104
  %v1114 = vmul.f32 %v1075, %v1104
  %v1115 = vmul.f32 %v1079, %v1104
  %v1116 = vmul.f32 %v1083, %v1104
  %v1117 = vmul.f32 %v1087, %v1104
  %v1118 = vmul.f32 %v1091, %v1104
  %v1119 = vmul.f32 %v1095, %v1104
  %v1120 = vmul.f32 %v1099, %v1104
  %v1121 = vmul.f32 %v306, %v1104
  %v1122 = vmul.f32 %v310, %v1104
  %v1123 = vmul.f32 %v314, %v1104
  %v1124 = vmul.f32 %v318, %v1104
  %v1125 = vmul.f32 %v322, %v1104
  %v1126 = vmul.f32 %v326, %v1104
  %v1127 = vmul.f32 %v330, %v1104
  %v1128 = vmul.f32 %v334, %v1104
  %v1129 = vmul.f32 %v338, %v1104
  %v1130 = vmul.f32 %v342, %v1104
  %v1131 = vmul.f32 %v346, %v1104
  %v1132 = vmul.f32 %v350, %v1104
  %v1133 = vmul.f32 %v354, %v1104
  %v1134 = vmul.f32 %v358, %v1104
  %v1135 = vmul.f32 %v362, %v1104
  %v1136 = vmul.f32 %v366, %v1104
  %v1137 = vadd.f32 %v1005, %v1105
  %v1138 = vadd.f32 %v1006, %v1106
  %v1139 = vadd.f32 %v1007, %v1107
  %v1140 = vadd.f32 %v1008, %v1108
  %v1141 = vadd.f32 %v1009, %v1109
  %v1142 = vadd.f32 %v1010, %v1110
  %v1143 = vadd.f32 %v1011, %v1111
  %v1144 = vadd.f32 %v1012, %v1112
  %v1145 = vadd.f32 %v1013, %v1113
  %v1146 = vadd.f32 %v1014, %v1114
  %v1147 = vadd.f32 %v1015, %v1115
  %v1148 = vadd.f32 %v1016, %v1116
  %v1149 = vadd.f32 %v1017, %v1117
  %v1150 = vadd.f32 %v1018, %v1118
  %v1151 = vadd.f32 %v1019, %v1119
  %v1152 = vadd.f32 %v1020, %v1120
  %v1153 = vadd.f32 %v1021, %v1121
  %v1154 = vadd.f32 %v1022, %v1122
  %v1155 = vadd.f32 %v1023, %v1123
  %v1156 = vadd.f32 %v1024, %v1124
  %v1157 = vadd.f32 %v1025, %v1125
  %v1158 = vadd.f32 %v1026, %v1126
  %v1159 = vadd.f32 %v1027, %v1127
  %v1160 = vadd.f32 %v1028, %v1128
  %v1161 = vadd.f32 %v1029, %v1129
  %v1162 = vadd.f32 %v1030, %v1130
  %v1163 = vadd.f32 %v1031, %v1131
  %v1164 = vadd.f32 %v1032, %v1132
  %v1165 = vadd.f32 %v1033, %v1133
  %v1166 = vadd.f32 %v1034, %v1134
  %v1167 = vadd.f32 %v1035, %v1135
  %v1168 = vadd.f32 %v1036, %v1136
  %v1169 = vadd.f32 %v1137, %v782
  %v1170 = vadd.f32 %v1138, %v782
  %v1171 = vadd.f32 %v1139, %v782
  %v1172 = vadd.f32 %v1140, %v782
  %v1173 = vadd.f32 %v1141, %v782
  %v1174 = vadd.f32 %v1142, %v782
  %v1175 = vadd.f32 %v1143, %v782
  %v1176 = vadd.f32 %v1144, %v782
  %v1177 = vadd.f32 %v1145, %v786
  %v1178 = vadd.f32 %v1146, %v786
  %v1179 = vadd.f32 %v1147, %v786
  %v1180 = vadd.f32 %v1148, %v786
  %v1181 = vadd.f32 %v1149, %v786
  %v1182 = vadd.f32 %v1150, %v786
  %v1183 = vadd.f32 %v1151, %v786
  %v1184 = vadd.f32 %v1152, %v786
  %v1185 = vadd.f32 %v1153, %v782
  %v1186 = vadd.f32 %v1154, %v782
  %v1187 = vadd.f32 %v1155, %v782
  %v1188 = vadd.f32 %v1156, %v782
  %v1189 = vadd.f32 %v1157, %v782
  %v1190 = vadd.f32 %v1158, %v782
  %v1191 = vadd.f32 %v1159, %v782
  %v1192 = vadd.f32 %v1160, %v782
  %v1193 = vadd.f32 %v1161, %v786
  %v1194 = vadd.f32 %v1162, %v786
  %v1195 = vadd.f32 %v1163, %v786
  %v1196 = vadd.f32 %v1164, %v786
  %v1197 = vadd.f32 %v1165, %v786
  %v1198 = vadd.f32 %v1166, %v786
  %v1199 = vadd.f32 %v1167, %v786
  %v1200 = vadd.f32 %v1168, %v786
  %v1201 = vlaneseq
  %v1202 = vshrl.u32 %v1201, 7
  %v1203 = vsub.s32 0, %v1202
  %v1204 = vrot.slane %v90, %v1203
  %v1205 = vadd.f32 %v1169, %v1204
  %v1206 = vadd.f32 %v1170, %v1204
  %v1207 = vadd.f32 %v1171, %v1204
  %v1208 = vadd.f32 %v1172, %v1204
  %v1209 = vadd.f32 %v1173, %v1204
  %v1210 = vadd.f32 %v1174, %v1204
  %v1211 = vadd.f32 %v1175, %v1204
  %v1212 = vadd.f32 %v1176, %v1204
  %v1213 = vadd.f32 %v1177, %v1204
  %v1214 = vadd.f32 %v1178, %v1204
  %v1215 = vadd.f32 %v1179, %v1204
  %v1216 = vadd.f32 %v1180, %v1204
  %v1217 = vadd.f32 %v1181, %v1204
  %v1218 = vadd.f32 %v1182, %v1204
  %v1219 = vadd.f32 %v1183, %v1204
  %v1220 = vadd.f32 %v1184, %v1204
  %v1221 = vadd.f32 %v1185, %v1204
  %v1222 = vadd.f32 %v1186, %v1204
  %v1223 = vadd.f32 %v1187, %v1204
  %v1224 = vadd.f32 %v1188, %v1204
  %v1225 = vadd.f32 %v1189, %v1204
  %v1226 = vadd.f32 %v1190, %v1204
  %v1227 = vadd.f32 %v1191, %v1204
  %v1228 = vadd.f32 %v1192, %v1204
  %v1229 = vadd.f32 %v1193, %v1204
  %v1230 = vadd.f32 %v1194, %v1204
  %v1231 = vadd.f32 %v1195, %v1204
  %v1232 = vadd.f32 %v1196, %v1204
  %v1233 = vadd.f32 %v1197, %v1204
  %v1234 = vadd.f32 %v1198, %v1204
  %v1235 = vadd.f32 %v1199, %v1204
  %v1236 = vadd.f32 %v1200, %v1204
  %v1237 = vmax.f32 %v1205, 0.0
  %v1238 = vmax.f32 %v1206, 0.0
  %v1239 = vmax.f32 %v1207, 0.0
  %v1240 = vmax.f32 %v1208, 0.0
  %v1241 = vmax.f32 %v1209, 0.0
  %v1242 = vmax.f32 %v1210, 0.0
  %v1243 = vmax.f32 %v1211, 0.0
  %v1244 = vmax.f32 %v1212, 0.0
  %v1245 = vmax.f32 %v1213, 0.0
  %v1246 = vmax.f32 %v1214, 0.0
  %v1247 = vmax.f32 %v1215, 0.0
  %v1248 = vmax.f32 %v1216, 0.0
  %v1249 = vmax.f32 %v1217, 0.0
  %v1250 = vmax.f32 %v1218, 0.0
  %v1251 = vmax.f32 %v1219, 0.0
  %v1252 = vmax.f32 %v1220, 0.0
  %v1253 = vmax.f32 %v1221, 0.0
  %v1254 = vmax.f32 %v1222, 0.0
  %v1255 = vmax.f32 %v1223, 0.0
  %v1256 = vmax.f32 %v1224, 0.0
  %v1257 = vmax.f32 %v1225, 0.0
  %v1258 = vmax.f32 %v1226, 0.0
  %v1259 = vmax.f32 %v1227, 0.0
  %v1260 = vmax.f32 %v1228, 0.0
  %v1261 = vmax.f32 %v1229, 0.0
  %v1262 = vmax.f32 %v1230, 0.0
  %v1263 = vmax.f32 %v1231, 0.0
  %v1264 = vmax.f32 %v1232, 0.0
  %v1265 = vmax.f32 %v1233, 0.0
  %v1266 = vmax.f32 %v1234, 0.0
  %v1267 = vmax.f32 %v1235, 0.0
  %v1268 = vmax.f32 %v1236, 0.0
  %v1270 = vsel %vm444, %v1237, 0
  %v1273 = vsel %vm444, %v1238, 0
  %v1276 = vsel %vm444, %v1239, 0
  %v1279 = vsel %vm444, %v1240, 0
  %v1282 = vsel %vm444, %v1241, 0
  %v1285 = vsel %vm444, %v1242, 0
  %v1288 = vsel %vm444, %v1243, 0
  %v1291 = vsel %vm444, %v1244, 0
  %v1294 = vsel %vm444, %v1245, 0
  %v1297 = vsel %vm444, %v1246, 0
  %v1300 = vsel %vm444, %v1247, 0
  %v1303 = vsel %vm444, %v1248, 0
  %v1306 = vsel %vm444, %v1249, 0
  %v1309 = vsel %vm444, %v1250, 0
  %v1312 = vsel %vm444, %v1251, 0
  %v1315 = vsel %vm444, %v1252, 0
  %v1318 = vsel %vm444, %v1253, 0
  %v1321 = vsel %vm444, %v1254, 0
  %v1324 = vsel %vm444, %v1255, 0
  %v1327 = vsel %vm444, %v1256, 0
  %v1330 = vsel %vm444, %v1257, 0
  %v1333 = vsel %vm444, %v1258, 0
  %v1336 = vsel %vm444, %v1259, 0
  %v1339 = vsel %vm444, %v1260, 0
  %v1342 = vsel %vm444, %v1261, 0
  %v1345 = vsel %vm444, %v1262, 0
  %v1348 = vsel %vm444, %v1263, 0
  %v1351 = vsel %vm444, %v1264, 0
  %v1354 = vsel %vm444, %v1265, 0
  %v1357 = vsel %vm444, %v1266, 0
  %v1360 = vsel %vm444, %v1267, 0
  %v1363 = vsel %vm444, %v1268, 0
  %1365 = vmatprep.subr.mxu0 0.0
  %1366 = vmatpush1.msra.mxu0 %v94
  %1367 = vmatprep.subr.mxu0 0.0
  %1368 = vmatpush1.msra.mxu0 %v95
  %1369 = vmatprep.subr.mxu0 0.0
  %1370 = vmatpush1.msra.mxu0 %v96
  %1371 = vmatprep.subr.mxu0 0.0
  %1372 = vmatpush1.msra.mxu0 %v97
  %1373 = vmatprep.subr.mxu0 0.0
  %1374 = vmatpush1.msra.mxu0 0.0
  %1375 = vmatprep.subr.mxu0 0.0
  %1376 = vmatpush1.msra.mxu0 0.0
  %1377 = vmatprep.subr.mxu0 0.0
  %1378 = vmatpush1.msra.mxu0 0.0
  %1379 = vmatprep.subr.mxu0 0.0
  %1380 = vmatpush1.msra.mxu0 0.0
  %1381 = vmatprep.subr.mxu0 0.0
  %1382 = vmatpush1.msra.mxu0 0.0
  %1383 = vmatprep.subr.mxu0 0.0
  %1384 = vmatpush1.msra.mxu0 0.0
  %1385 = vmatprep.subr.mxu0 0.0
  %1386 = vmatpush1.msra.mxu0 0.0
  %1387 = vmatprep.subr.mxu0 0.0
  %1388 = vmatpush1.msra.mxu0 0.0
  %1389 = vmatprep.subr.mxu0 0.0
  %1390 = vmatpush1.msra.mxu0 0.0
  %1391 = vmatprep.subr.mxu0 0.0
  %1392 = vmatpush1.msra.mxu0 0.0
  %1393 = vmatprep.subr.mxu0 0.0
  %1394 = vmatpush1.msra.mxu0 0.0
  %1395 = vmatprep.subr.mxu0 0.0
  %1396 = vmatpush1.msra.mxu0 0.0
  %1397 = vmatprep.subr.mxu0 0.0
  %1398 = vmatpush1.msra.mxu0 0.0
  %1399 = vmatprep.subr.mxu0 0.0
  %1400 = vmatpush1.msra.mxu0 0.0
  %1401 = vmatprep.subr.mxu0 0.0
  %1402 = vmatpush1.msra.mxu0 0.0
  %1403 = vmatprep.subr.mxu0 0.0
  %1404 = vmatpush1.msra.mxu0 0.0
  %1405 = vmatprep.subr.mxu0 0.0
  %1406 = vmatpush1.msra.mxu0 0.0
  %1407 = vmatprep.subr.mxu0 0.0
  %1408 = vmatpush1.msra.mxu0 0.0
  %1409 = vmatprep.subr.mxu0 0.0
  %1410 = vmatpush1.msra.mxu0 0.0
  %1411 = vmatprep.subr.mxu0 0.0
  %1412 = vmatpush1.msra.mxu0 0.0
  %1413 = vmatprep.subr.mxu0 0.0
  %1414 = vmatpush1.msra.mxu0 0.0
  %1415 = vmatprep.subr.mxu0 0.0
  %1416 = vmatpush1.msra.mxu0 0.0
  %1417 = vmatprep.subr.mxu0 0.0
  %1418 = vmatpush1.msra.mxu0 0.0
  %1419 = vmatprep.subr.mxu0 0.0
  %1420 = vmatpush1.msra.mxu0 0.0
  %1421 = vmatprep.subr.mxu0 0.0
  %1422 = vmatpush1.msra.mxu0 0.0
  %1423 = vmatprep.subr.mxu0 0.0
  %1424 = vmatpush1.msra.mxu0 0.0
  %1425 = vmatprep.subr.mxu0 0.0
  %1426 = vmatpush1.msra.mxu0 0.0
  %1427 = vmatprep.subr.mxu0 0.0
  %1428 = vmatpush1.msra.mxu0 0.0
  %1429 = vmatprep.mubr.f32.mxu0 0.0
  %1430 = vmatmul.mubr.f32.gmra.mrb[0].mxu0 %v1270
  %v1431 = vpop.f32.mrb[0].mxu0
  %v1432 = vadd.f32 0.0, %v1431
  %v1433 = vpop.f32.mrb[0].mxu0
  %1434 = vmatprep.mubr.f32.mxu0 0.0
  %1435 = vmatmul.mubr.f32.gmra.mrb[0].mxu0 %v1273
  %v1436 = vpop.f32.mrb[0].mxu0
  %v1437 = vadd.f32 0.0, %v1436
  %v1438 = vpop.f32.mrb[0].mxu0
  %1439 = vmatprep.mubr.f32.mxu0 0.0
  %1440 = vmatmul.mubr.f32.gmra.mrb[0].mxu0 %v1276
  %v1441 = vpop.f32.mrb[0].mxu0
  %v1442 = vadd.f32 0.0, %v1441
  %v1443 = vpop.f32.mrb[0].mxu0
  %1444 = vmatprep.mubr.f32.mxu0 0.0
  %1445 = vmatmul.mubr.f32.gmra.mrb[0].mxu0 %v1279
  %v1446 = vpop.f32.mrb[0].mxu0
  %v1447 = vadd.f32 0.0, %v1446
  %v1448 = vpop.f32.mrb[0].mxu0
  %1449 = vmatprep.mubr.f32.mxu0 0.0
  %1450 = vmatmul.mubr.f32.gmra.mrb[0].mxu0 %v1282
  %v1451 = vpop.f32.mrb[0].mxu0
  %v1452 = vadd.f32 0.0, %v1451
  %v1453 = vpop.f32.mrb[0].mxu0
  %1454 = vmatprep.mubr.f32.mxu0 0.0
  %1455 = vmatmul.mubr.f32.gmra.mrb[0].mxu0 %v1285
  %v1456 = vpop.f32.mrb[0].mxu0
  %v1457 = vadd.f32 0.0, %v1456
  %v1458 = vpop.f32.mrb[0].mxu0
  %1459 = vmatprep.mubr.f32.mxu0 0.0
  %1460 = vmatmul.mubr.f32.gmra.mrb[0].mxu0 %v1288
  %v1461 = vpop.f32.mrb[0].mxu0
  %v1462 = vadd.f32 0.0, %v1461
  %v1463 = vpop.f32.mrb[0].mxu0
  %1464 = vmatprep.mubr.f32.mxu0 0.0
  %1465 = vmatmul.mubr.f32.gmra.mrb[0].mxu0 %v1291
  %v1466 = vpop.f32.mrb[0].mxu0
  %v1467 = vadd.f32 0.0, %v1466
  %v1468 = vpop.f32.mrb[0].mxu0
  %1469 = vmatprep.mubr.f32.mxu0 0.0
  %1470 = vmatmul.mubr.f32.gmra.mrb[0].mxu0 %v1294
  %v1471 = vpop.f32.mrb[0].mxu0
  %v1472 = vadd.f32 0.0, %v1471
  %v1473 = vpop.f32.mrb[0].mxu0
  %1474 = vmatprep.mubr.f32.mxu0 0.0
  %1475 = vmatmul.mubr.f32.gmra.mrb[0].mxu0 %v1297
  %v1476 = vpop.f32.mrb[0].mxu0
  %v1477 = vadd.f32 0.0, %v1476
  %v1478 = vpop.f32.mrb[0].mxu0
  %1479 = vmatprep.mubr.f32.mxu0 0.0
  %1480 = vmatmul.mubr.f32.gmra.mrb[0].mxu0 %v1300
  %v1481 = vpop.f32.mrb[0].mxu0
  %v1482 = vadd.f32 0.0, %v1481
  %v1483 = vpop.f32.mrb[0].mxu0
  %1484 = vmatprep.mubr.f32.mxu0 0.0
  %1485 = vmatmul.mubr.f32.gmra.mrb[0].mxu0 %v1303
  %v1486 = vpop.f32.mrb[0].mxu0
  %v1487 = vadd.f32 0.0, %v1486
  %v1488 = vpop.f32.mrb[0].mxu0
  %1489 = vmatprep.mubr.f32.mxu0 0.0
  %1490 = vmatmul.mubr.f32.gmra.mrb[0].mxu0 %v1306
  %v1491 = vpop.f32.mrb[0].mxu0
  %v1492 = vadd.f32 0.0, %v1491
  %v1493 = vpop.f32.mrb[0].mxu0
  %1494 = vmatprep.mubr.f32.mxu0 0.0
  %1495 = vmatmul.mubr.f32.gmra.mrb[0].mxu0 %v1309
  %v1496 = vpop.f32.mrb[0].mxu0
  %v1497 = vadd.f32 0.0, %v1496
  %v1498 = vpop.f32.mrb[0].mxu0
  %1499 = vmatprep.mubr.f32.mxu0 0.0
  %1500 = vmatmul.mubr.f32.gmra.mrb[0].mxu0 %v1312
  %v1501 = vpop.f32.mrb[0].mxu0
  %v1502 = vadd.f32 0.0, %v1501
  %v1503 = vpop.f32.mrb[0].mxu0
  %1504 = vmatprep.mubr.f32.mxu0 0.0
  %1505 = vmatmul.mubr.f32.gmra.mrb[0].mxu0 %v1315
  %v1506 = vpop.f32.mrb[0].mxu0
  %v1507 = vadd.f32 0.0, %v1506
  %v1508 = vpop.f32.mrb[0].mxu0
  %1509 = vmatprep.mubr.f32.mxu0 0.0
  %1510 = vmatmul.mubr.f32.gmra.mrb[0].mxu0 %v1318
  %v1511 = vpop.f32.mrb[0].mxu0
  %v1512 = vadd.f32 0.0, %v1511
  %v1513 = vpop.f32.mrb[0].mxu0
  %1514 = vmatprep.mubr.f32.mxu0 0.0
  %1515 = vmatmul.mubr.f32.gmra.mrb[0].mxu0 %v1321
  %v1516 = vpop.f32.mrb[0].mxu0
  %v1517 = vadd.f32 0.0, %v1516
  %v1518 = vpop.f32.mrb[0].mxu0
  %1519 = vmatprep.mubr.f32.mxu0 0.0
  %1520 = vmatmul.mubr.f32.gmra.mrb[0].mxu0 %v1324
  %v1521 = vpop.f32.mrb[0].mxu0
  %v1522 = vadd.f32 0.0, %v1521
  %v1523 = vpop.f32.mrb[0].mxu0
  %1524 = vmatprep.mubr.f32.mxu0 0.0
  %1525 = vmatmul.mubr.f32.gmra.mrb[0].mxu0 %v1327
  %v1526 = vpop.f32.mrb[0].mxu0
  %v1527 = vadd.f32 0.0, %v1526
  %v1528 = vpop.f32.mrb[0].mxu0
  %1529 = vmatprep.mubr.f32.mxu0 0.0
  %1530 = vmatmul.mubr.f32.gmra.mrb[0].mxu0 %v1330
  %v1531 = vpop.f32.mrb[0].mxu0
  %v1532 = vadd.f32 0.0, %v1531
  %v1533 = vpop.f32.mrb[0].mxu0
  %1534 = vmatprep.mubr.f32.mxu0 0.0
  %1535 = vmatmul.mubr.f32.gmra.mrb[0].mxu0 %v1333
  %v1536 = vpop.f32.mrb[0].mxu0
  %v1537 = vadd.f32 0.0, %v1536
  %v1538 = vpop.f32.mrb[0].mxu0
  %1539 = vmatprep.mubr.f32.mxu0 0.0
  %1540 = vmatmul.mubr.f32.gmra.mrb[0].mxu0 %v1336
  %v1541 = vpop.f32.mrb[0].mxu0
  %v1542 = vadd.f32 0.0, %v1541
  %v1543 = vpop.f32.mrb[0].mxu0
  %1544 = vmatprep.mubr.f32.mxu0 0.0
  %1545 = vmatmul.mubr.f32.gmra.mrb[0].mxu0 %v1339
  %v1546 = vpop.f32.mrb[0].mxu0
  %v1547 = vadd.f32 0.0, %v1546
  %v1548 = vpop.f32.mrb[0].mxu0
  %1549 = vmatprep.mubr.f32.mxu0 0.0
  %1550 = vmatmul.mubr.f32.gmra.mrb[0].mxu0 %v1342
  %v1551 = vpop.f32.mrb[0].mxu0
  %v1552 = vadd.f32 0.0, %v1551
  %v1553 = vpop.f32.mrb[0].mxu0
  %1554 = vmatprep.mubr.f32.mxu0 0.0
  %1555 = vmatmul.mubr.f32.gmra.mrb[0].mxu0 %v1345
  %v1556 = vpop.f32.mrb[0].mxu0
  %v1557 = vadd.f32 0.0, %v1556
  %v1558 = vpop.f32.mrb[0].mxu0
  %1559 = vmatprep.mubr.f32.mxu0 0.0
  %1560 = vmatmul.mubr.f32.gmra.mrb[0].mxu0 %v1348
  %v1561 = vpop.f32.mrb[0].mxu0
  %v1562 = vadd.f32 0.0, %v1561
  %v1563 = vpop.f32.mrb[0].mxu0
  %1564 = vmatprep.mubr.f32.mxu0 0.0
  %1565 = vmatmul.mubr.f32.gmra.mrb[0].mxu0 %v1351
  %v1566 = vpop.f32.mrb[0].mxu0
  %v1567 = vadd.f32 0.0, %v1566
  %v1568 = vpop.f32.mrb[0].mxu0
  %1569 = vmatprep.mubr.f32.mxu0 0.0
  %1570 = vmatmul.mubr.f32.gmra.mrb[0].mxu0 %v1354
  %v1571 = vpop.f32.mrb[0].mxu0
  %v1572 = vadd.f32 0.0, %v1571
  %v1573 = vpop.f32.mrb[0].mxu0
  %1574 = vmatprep.mubr.f32.mxu0 0.0
  %1575 = vmatmul.mubr.f32.gmra.mrb[0].mxu0 %v1357
  %v1576 = vpop.f32.mrb[0].mxu0
  %v1577 = vadd.f32 0.0, %v1576
  %v1578 = vpop.f32.mrb[0].mxu0
  %1579 = vmatprep.mubr.f32.mxu0 0.0
  %1580 = vmatmul.mubr.f32.gmra.mrb[0].mxu0 %v1360
  %v1581 = vpop.f32.mrb[0].mxu0
  %v1582 = vadd.f32 0.0, %v1581
  %v1583 = vpop.f32.mrb[0].mxu0
  %1584 = vmatprep.mubr.f32.mxu0 0.0
  %1585 = vmatmul.mubr.f32.gmra.mrb[0].mxu0 %v1363
  %v1586 = vpop.f32.mrb[0].mxu0
  %v1587 = vadd.f32 0.0, %v1586
  %v1588 = vpop.f32.mrb[0].mxu0
  %1589 = vdwg.mxu0
  %v1590 = vadd.f32 %v20, %v1432
  %v1591 = vadd.f32 %v21, %v1437
  %v1592 = vadd.f32 %v22, %v1442
  %v1593 = vadd.f32 %v23, %v1447
  %v1594 = vadd.f32 %v24, %v1452
  %v1595 = vadd.f32 %v25, %v1457
  %v1596 = vadd.f32 %v26, %v1462
  %v1597 = vadd.f32 %v27, %v1467
  %v1598 = vadd.f32 %v28, %v1472
  %v1599 = vadd.f32 %v29, %v1477
  %v1600 = vadd.f32 %v30, %v1482
  %v1601 = vadd.f32 %v31, %v1487
  %v1602 = vadd.f32 %v32, %v1492
  %v1603 = vadd.f32 %v33, %v1497
  %v1604 = vadd.f32 %v34, %v1502
  %v1605 = vadd.f32 %v35, %v1507
  %v1606 = vadd.f32 %v36, %v1512
  %v1607 = vadd.f32 %v37, %v1517
  %v1608 = vadd.f32 %v38, %v1522
  %v1609 = vadd.f32 %v39, %v1527
  %v1610 = vadd.f32 %v40, %v1532
  %v1611 = vadd.f32 %v41, %v1537
  %v1612 = vadd.f32 %v42, %v1542
  %v1613 = vadd.f32 %v43, %v1547
  %v1614 = vadd.f32 %v44, %v1552
  %v1615 = vadd.f32 %v45, %v1557
  %v1616 = vadd.f32 %v46, %v1562
  %v1617 = vadd.f32 %v47, %v1567
  %v1618 = vadd.f32 %v48, %v1572
  %v1619 = vadd.f32 %v49, %v1577
  %v1620 = vadd.f32 %v50, %v1582
  %v1621 = vadd.f32 %v51, %v1587
  %v1622 = vlaneseq
  %v1623 = vshrl.u32 %v1622, 7
  %v1624 = vsub.s32 0, %v1623
  %v1625 = vrot.slane %v102, %v1624
  %v1626 = vadd.f32 %v1590, %v1625
  %v1627 = vadd.f32 %v1591, %v1625
  %v1628 = vadd.f32 %v1592, %v1625
  %v1629 = vadd.f32 %v1593, %v1625
  %v1630 = vadd.f32 %v1594, %v1625
  %v1631 = vadd.f32 %v1595, %v1625
  %v1632 = vadd.f32 %v1596, %v1625
  %v1633 = vadd.f32 %v1597, %v1625
  %v1634 = vadd.f32 %v1598, %v1625
  %v1635 = vadd.f32 %v1599, %v1625
  %v1636 = vadd.f32 %v1600, %v1625
  %v1637 = vadd.f32 %v1601, %v1625
  %v1638 = vadd.f32 %v1602, %v1625
  %v1639 = vadd.f32 %v1603, %v1625
  %v1640 = vadd.f32 %v1604, %v1625
  %v1641 = vadd.f32 %v1605, %v1625
  %v1642 = vadd.f32 %v1606, %v1625
  %v1643 = vadd.f32 %v1607, %v1625
  %v1644 = vadd.f32 %v1608, %v1625
  %v1645 = vadd.f32 %v1609, %v1625
  %v1646 = vadd.f32 %v1610, %v1625
  %v1647 = vadd.f32 %v1611, %v1625
  %v1648 = vadd.f32 %v1612, %v1625
  %v1649 = vadd.f32 %v1613, %v1625
  %v1650 = vadd.f32 %v1614, %v1625
  %v1651 = vadd.f32 %v1615, %v1625
  %v1652 = vadd.f32 %v1616, %v1625
  %v1653 = vadd.f32 %v1617, %v1625
  %v1654 = vadd.f32 %v1618, %v1625
  %v1655 = vadd.f32 %v1619, %v1625
  %v1656 = vadd.f32 %v1620, %v1625
  %v1657 = vadd.f32 %v1621, %v1625
  %1659 = vset.pattern.permute.xlu0 0
  %1660 = vperm.xlu0 %1659, %v1642
  %v1661 = vpop.permute.xlu0 %1660
  %1664 = vset.pattern.permute.xlu0 0
  %1665 = vperm.xlu0 %1664, %v1643
  %v1666 = vpop.permute.xlu0 %1665
  %1669 = vset.pattern.permute.xlu0 0
  %1670 = vperm.xlu0 %1669, %v1644
  %v1671 = vpop.permute.xlu0 %1670
  %1674 = vset.pattern.permute.xlu0 0
  %1675 = vperm.xlu0 %1674, %v1645
  %v1676 = vpop.permute.xlu0 %1675
  %1679 = vset.pattern.permute.xlu0 0
  %1680 = vperm.xlu0 %1679, %v1646
  %v1681 = vpop.permute.xlu0 %1680
  %1684 = vset.pattern.permute.xlu0 0
  %1685 = vperm.xlu0 %1684, %v1647
  %v1686 = vpop.permute.xlu0 %1685
  %1689 = vset.pattern.permute.xlu0 0
  %1690 = vperm.xlu0 %1689, %v1648
  %v1691 = vpop.permute.xlu0 %1690
  %1694 = vset.pattern.permute.xlu0 0
  %1695 = vperm.xlu0 %1694, %v1649
  %v1696 = vpop.permute.xlu0 %1695
  %1699 = vset.pattern.permute.xlu0 0
  %1700 = vperm.xlu0 %1699, %v1650
  %v1701 = vpop.permute.xlu0 %1700
  %1704 = vset.pattern.permute.xlu0 0
  %1705 = vperm.xlu0 %1704, %v1651
  %v1706 = vpop.permute.xlu0 %1705
  %1709 = vset.pattern.permute.xlu0 0
  %1710 = vperm.xlu0 %1709, %v1652
  %v1711 = vpop.permute.xlu0 %1710
  %1714 = vset.pattern.permute.xlu0 0
  %1715 = vperm.xlu0 %1714, %v1653
  %v1716 = vpop.permute.xlu0 %1715
  %1719 = vset.pattern.permute.xlu0 0
  %1720 = vperm.xlu0 %1719, %v1654
  %v1721 = vpop.permute.xlu0 %1720
  %1724 = vset.pattern.permute.xlu0 0
  %1725 = vperm.xlu0 %1724, %v1655
  %v1726 = vpop.permute.xlu0 %1725
  %1729 = vset.pattern.permute.xlu0 0
  %1730 = vperm.xlu0 %1729, %v1656
  %v1731 = vpop.permute.xlu0 %1730
  %1734 = vset.pattern.permute.xlu0 0
  %1735 = vperm.xlu0 %1734, %v1657
  %v1736 = vpop.permute.xlu0 %1735
  %v1738 = vlaneseq
  %v1739 = vshrl.u32 %v1738, 7
  %v1740 = vsub.s32 0, %v1739
  %v1741 = vrot.slane %v78, %v1740
  %v1742 = vmul.f32 %v1661, %v1741
  %v1743 = vmul.f32 %v1666, %v1741
  %v1744 = vmul.f32 %v1671, %v1741
  %v1745 = vmul.f32 %v1676, %v1741
  %v1746 = vmul.f32 %v1681, %v1741
  %v1747 = vmul.f32 %v1686, %v1741
  %v1748 = vmul.f32 %v1691, %v1741
  %v1749 = vmul.f32 %v1696, %v1741
  %v1750 = vmul.f32 %v1701, %v1741
  %v1751 = vmul.f32 %v1706, %v1741
  %v1752 = vmul.f32 %v1711, %v1741
  %v1753 = vmul.f32 %v1716, %v1741
  %v1754 = vmul.f32 %v1721, %v1741
  %v1755 = vmul.f32 %v1726, %v1741
  %v1756 = vmul.f32 %v1731, %v1741
  %v1757 = vmul.f32 %v1736, %v1741
  %1758 = vset.pattern.permute.xlu0 1
  %1759 = vperm.xlu0 %1758, %v1642
  %v1760 = vpop.permute.xlu0 %1759
  %1762 = vset.pattern.permute.xlu0 1
  %1763 = vperm.xlu0 %1762, %v1643
  %v1764 = vpop.permute.xlu0 %1763
  %1766 = vset.pattern.permute.xlu0 1
  %1767 = vperm.xlu0 %1766, %v1644
  %v1768 = vpop.permute.xlu0 %1767
  %1770 = vset.pattern.permute.xlu0 1
  %1771 = vperm.xlu0 %1770, %v1645
  %v1772 = vpop.permute.xlu0 %1771
  %1774 = vset.pattern.permute.xlu0 1
  %1775 = vperm.xlu0 %1774, %v1646
  %v1776 = vpop.permute.xlu0 %1775
  %1778 = vset.pattern.permute.xlu0 1
  %1779 = vperm.xlu0 %1778, %v1647
  %v1780 = vpop.permute.xlu0 %1779
  %1782 = vset.pattern.permute.xlu0 1
  %1783 = vperm.xlu0 %1782, %v1648
  %v1784 = vpop.permute.xlu0 %1783
  %1786 = vset.pattern.permute.xlu0 1
  %1787 = vperm.xlu0 %1786, %v1649
  %v1788 = vpop.permute.xlu0 %1787
  %1790 = vset.pattern.permute.xlu0 1
  %1791 = vperm.xlu0 %1790, %v1650
  %v1792 = vpop.permute.xlu0 %1791
  %1794 = vset.pattern.permute.xlu0 1
  %1795 = vperm.xlu0 %1794, %v1651
  %v1796 = vpop.permute.xlu0 %1795
  %1798 = vset.pattern.permute.xlu0 1
  %1799 = vperm.xlu0 %1798, %v1652
  %v1800 = vpop.permute.xlu0 %1799
  %1802 = vset.pattern.permute.xlu0 1
  %1803 = vperm.xlu0 %1802, %v1653
  %v1804 = vpop.permute.xlu0 %1803
  %1806 = vset.pattern.permute.xlu0 1
  %1807 = vperm.xlu0 %1806, %v1654
  %v1808 = vpop.permute.xlu0 %1807
  %1810 = vset.pattern.permute.xlu0 1
  %1811 = vperm.xlu0 %1810, %v1655
  %v1812 = vpop.permute.xlu0 %1811
  %1814 = vset.pattern.permute.xlu0 1
  %1815 = vperm.xlu0 %1814, %v1656
  %v1816 = vpop.permute.xlu0 %1815
  %1818 = vset.pattern.permute.xlu0 1
  %1819 = vperm.xlu0 %1818, %v1657
  %v1820 = vpop.permute.xlu0 %1819
  %v1822 = vlaneseq
  %v1823 = vshrl.u32 %v1822, 7
  %v1824 = vsub.s32 1, %v1823
  %v1825 = vrot.slane %v78, %v1824
  %v1826 = vmul.f32 %v1760, %v1825
  %v1827 = vmul.f32 %v1764, %v1825
  %v1828 = vmul.f32 %v1768, %v1825
  %v1829 = vmul.f32 %v1772, %v1825
  %v1830 = vmul.f32 %v1776, %v1825
  %v1831 = vmul.f32 %v1780, %v1825
  %v1832 = vmul.f32 %v1784, %v1825
  %v1833 = vmul.f32 %v1788, %v1825
  %v1834 = vmul.f32 %v1792, %v1825
  %v1835 = vmul.f32 %v1796, %v1825
  %v1836 = vmul.f32 %v1800, %v1825
  %v1837 = vmul.f32 %v1804, %v1825
  %v1838 = vmul.f32 %v1808, %v1825
  %v1839 = vmul.f32 %v1812, %v1825
  %v1840 = vmul.f32 %v1816, %v1825
  %v1841 = vmul.f32 %v1820, %v1825
  %v1842 = vadd.f32 %v1742, %v1826
  %v1843 = vadd.f32 %v1743, %v1827
  %v1844 = vadd.f32 %v1744, %v1828
  %v1845 = vadd.f32 %v1745, %v1829
  %v1846 = vadd.f32 %v1746, %v1830
  %v1847 = vadd.f32 %v1747, %v1831
  %v1848 = vadd.f32 %v1748, %v1832
  %v1849 = vadd.f32 %v1749, %v1833
  %v1850 = vadd.f32 %v1750, %v1834
  %v1851 = vadd.f32 %v1751, %v1835
  %v1852 = vadd.f32 %v1752, %v1836
  %v1853 = vadd.f32 %v1753, %v1837
  %v1854 = vadd.f32 %v1754, %v1838
  %v1855 = vadd.f32 %v1755, %v1839
  %v1856 = vadd.f32 %v1756, %v1840
  %v1857 = vadd.f32 %v1757, %v1841
  %1858 = vset.pattern.permute.xlu0 2
  %1859 = vperm.xlu0 %1858, %v1642
  %v1860 = vpop.permute.xlu0 %1859
  %1862 = vset.pattern.permute.xlu0 2
  %1863 = vperm.xlu0 %1862, %v1643
  %v1864 = vpop.permute.xlu0 %1863
  %1866 = vset.pattern.permute.xlu0 2
  %1867 = vperm.xlu0 %1866, %v1644
  %v1868 = vpop.permute.xlu0 %1867
  %1870 = vset.pattern.permute.xlu0 2
  %1871 = vperm.xlu0 %1870, %v1645
  %v1872 = vpop.permute.xlu0 %1871
  %1874 = vset.pattern.permute.xlu0 2
  %1875 = vperm.xlu0 %1874, %v1646
  %v1876 = vpop.permute.xlu0 %1875
  %1878 = vset.pattern.permute.xlu0 2
  %1879 = vperm.xlu0 %1878, %v1647
  %v1880 = vpop.permute.xlu0 %1879
  %1882 = vset.pattern.permute.xlu0 2
  %1883 = vperm.xlu0 %1882, %v1648
  %v1884 = vpop.permute.xlu0 %1883
  %1886 = vset.pattern.permute.xlu0 2
  %1887 = vperm.xlu0 %1886, %v1649
  %v1888 = vpop.permute.xlu0 %1887
  %1890 = vset.pattern.permute.xlu0 2
  %1891 = vperm.xlu0 %1890, %v1650
  %v1892 = vpop.permute.xlu0 %1891
  %1894 = vset.pattern.permute.xlu0 2
  %1895 = vperm.xlu0 %1894, %v1651
  %v1896 = vpop.permute.xlu0 %1895
  %1898 = vset.pattern.permute.xlu0 2
  %1899 = vperm.xlu0 %1898, %v1652
  %v1900 = vpop.permute.xlu0 %1899
  %1902 = vset.pattern.permute.xlu0 2
  %1903 = vperm.xlu0 %1902, %v1653
  %v1904 = vpop.permute.xlu0 %1903
  %1906 = vset.pattern.permute.xlu0 2
  %1907 = vperm.xlu0 %1906, %v1654
  %v1908 = vpop.permute.xlu0 %1907
  %1910 = vset.pattern.permute.xlu0 2
  %1911 = vperm.xlu0 %1910, %v1655
  %v1912 = vpop.permute.xlu0 %1911
  %1914 = vset.pattern.permute.xlu0 2
  %1915 = vperm.xlu0 %1914, %v1656
  %v1916 = vpop.permute.xlu0 %1915
  %1918 = vset.pattern.permute.xlu0 2
  %1919 = vperm.xlu0 %1918, %v1657
  %v1920 = vpop.permute.xlu0 %1919
  %v1922 = vlaneseq
  %v1923 = vshrl.u32 %v1922, 7
  %v1924 = vsub.s32 2, %v1923
  %v1925 = vrot.slane %v78, %v1924
  %v1926 = vmul.f32 %v1860, %v1925
  %v1927 = vmul.f32 %v1864, %v1925
  %v1928 = vmul.f32 %v1868, %v1925
  %v1929 = vmul.f32 %v1872, %v1925
  %v1930 = vmul.f32 %v1876, %v1925
  %v1931 = vmul.f32 %v1880, %v1925
  %v1932 = vmul.f32 %v1884, %v1925
  %v1933 = vmul.f32 %v1888, %v1925
  %v1934 = vmul.f32 %v1892, %v1925
  %v1935 = vmul.f32 %v1896, %v1925
  %v1936 = vmul.f32 %v1900, %v1925
  %v1937 = vmul.f32 %v1904, %v1925
  %v1938 = vmul.f32 %v1908, %v1925
  %v1939 = vmul.f32 %v1912, %v1925
  %v1940 = vmul.f32 %v1916, %v1925
  %v1941 = vmul.f32 %v1920, %v1925
  %v1942 = vadd.f32 %v1842, %v1926
  %v1943 = vadd.f32 %v1843, %v1927
  %v1944 = vadd.f32 %v1844, %v1928
  %v1945 = vadd.f32 %v1845, %v1929
  %v1946 = vadd.f32 %v1846, %v1930
  %v1947 = vadd.f32 %v1847, %v1931
  %v1948 = vadd.f32 %v1848, %v1932
  %v1949 = vadd.f32 %v1849, %v1933
  %v1950 = vadd.f32 %v1850, %v1934
  %v1951 = vadd.f32 %v1851, %v1935
  %v1952 = vadd.f32 %v1852, %v1936
  %v1953 = vadd.f32 %v1853, %v1937
  %v1954 = vadd.f32 %v1854, %v1938
  %v1955 = vadd.f32 %v1855, %v1939
  %v1956 = vadd.f32 %v1856, %v1940
  %v1957 = vadd.f32 %v1857, %v1941
  %1959 = vset.pattern.permute.xlu0 0
  %1960 = vperm.xlu0 %1959, %v52
  %v1961 = vpop.permute.xlu0 %1960
  %1964 = vset.pattern.permute.xlu0 0
  %1965 = vperm.xlu0 %1964, %v53
  %v1966 = vpop.permute.xlu0 %1965
  %1969 = vset.pattern.permute.xlu0 0
  %1970 = vperm.xlu0 %1969, %v54
  %v1971 = vpop.permute.xlu0 %1970
  %1974 = vset.pattern.permute.xlu0 0
  %1975 = vperm.xlu0 %1974, %v55
  %v1976 = vpop.permute.xlu0 %1975
  %1979 = vset.pattern.permute.xlu0 0
  %1980 = vperm.xlu0 %1979, %v56
  %v1981 = vpop.permute.xlu0 %1980
  %1984 = vset.pattern.permute.xlu0 0
  %1985 = vperm.xlu0 %1984, %v57
  %v1986 = vpop.permute.xlu0 %1985
  %1989 = vset.pattern.permute.xlu0 0
  %1990 = vperm.xlu0 %1989, %v58
  %v1991 = vpop.permute.xlu0 %1990
  %1994 = vset.pattern.permute.xlu0 0
  %1995 = vperm.xlu0 %1994, %v59
  %v1996 = vpop.permute.xlu0 %1995
  %1999 = vset.pattern.permute.xlu0 0
  %2000 = vperm.xlu0 %1999, %v60
  %v2001 = vpop.permute.xlu0 %2000
  %2004 = vset.pattern.permute.xlu0 0
  %2005 = vperm.xlu0 %2004, %v61
  %v2006 = vpop.permute.xlu0 %2005
  %2009 = vset.pattern.permute.xlu0 0
  %2010 = vperm.xlu0 %2009, %v62
  %v2011 = vpop.permute.xlu0 %2010
  %2014 = vset.pattern.permute.xlu0 0
  %2015 = vperm.xlu0 %2014, %v63
  %v2016 = vpop.permute.xlu0 %2015
  %2019 = vset.pattern.permute.xlu0 0
  %2020 = vperm.xlu0 %2019, %v64
  %v2021 = vpop.permute.xlu0 %2020
  %2024 = vset.pattern.permute.xlu0 0
  %2025 = vperm.xlu0 %2024, %v65
  %v2026 = vpop.permute.xlu0 %2025
  %2029 = vset.pattern.permute.xlu0 0
  %2030 = vperm.xlu0 %2029, %v66
  %v2031 = vpop.permute.xlu0 %2030
  %2034 = vset.pattern.permute.xlu0 0
  %2035 = vperm.xlu0 %2034, %v67
  %v2036 = vpop.permute.xlu0 %2035
  %v2038 = vlaneseq
  %v2039 = vshrl.u32 %v2038, 7
  %v2040 = vsub.s32 3, %v2039
  %v2041 = vrot.slane %v78, %v2040
  %v2042 = vmul.f32 %v1961, %v2041
  %v2043 = vmul.f32 %v1966, %v2041
  %v2044 = vmul.f32 %v1971, %v2041
  %v2045 = vmul.f32 %v1976, %v2041
  %v2046 = vmul.f32 %v1981, %v2041
  %v2047 = vmul.f32 %v1986, %v2041
  %v2048 = vmul.f32 %v1991, %v2041
  %v2049 = vmul.f32 %v1996, %v2041
  %v2050 = vmul.f32 %v2001, %v2041
  %v2051 = vmul.f32 %v2006, %v2041
  %v2052 = vmul.f32 %v2011, %v2041
  %v2053 = vmul.f32 %v2016, %v2041
  %v2054 = vmul.f32 %v2021, %v2041
  %v2055 = vmul.f32 %v2026, %v2041
  %v2056 = vmul.f32 %v2031, %v2041
  %v2057 = vmul.f32 %v2036, %v2041
  %2058 = vset.pattern.permute.xlu0 1
  %2059 = vperm.xlu0 %2058, %v52
  %v2060 = vpop.permute.xlu0 %2059
  %2062 = vset.pattern.permute.xlu0 1
  %2063 = vperm.xlu0 %2062, %v53
  %v2064 = vpop.permute.xlu0 %2063
  %2066 = vset.pattern.permute.xlu0 1
  %2067 = vperm.xlu0 %2066, %v54
  %v2068 = vpop.permute.xlu0 %2067
  %2070 = vset.pattern.permute.xlu0 1
  %2071 = vperm.xlu0 %2070, %v55
  %v2072 = vpop.permute.xlu0 %2071
  %2074 = vset.pattern.permute.xlu0 1
  %2075 = vperm.xlu0 %2074, %v56
  %v2076 = vpop.permute.xlu0 %2075
  %2078 = vset.pattern.permute.xlu0 1
  %2079 = vperm.xlu0 %2078, %v57
  %v2080 = vpop.permute.xlu0 %2079
  %2082 = vset.pattern.permute.xlu0 1
  %2083 = vperm.xlu0 %2082, %v58
  %v2084 = vpop.permute.xlu0 %2083
  %2086 = vset.pattern.permute.xlu0 1
  %2087 = vperm.xlu0 %2086, %v59
  %v2088 = vpop.permute.xlu0 %2087
  %2090 = vset.pattern.permute.xlu0 1
  %2091 = vperm.xlu0 %2090, %v60
  %v2092 = vpop.permute.xlu0 %2091
  %2094 = vset.pattern.permute.xlu0 1
  %2095 = vperm.xlu0 %2094, %v61
  %v2096 = vpop.permute.xlu0 %2095
  %2098 = vset.pattern.permute.xlu0 1
  %2099 = vperm.xlu0 %2098, %v62
  %v2100 = vpop.permute.xlu0 %2099
  %2102 = vset.pattern.permute.xlu0 1
  %2103 = vperm.xlu0 %2102, %v63
  %v2104 = vpop.permute.xlu0 %2103
  %2106 = vset.pattern.permute.xlu0 1
  %2107 = vperm.xlu0 %2106, %v64
  %v2108 = vpop.permute.xlu0 %2107
  %2110 = vset.pattern.permute.xlu0 1
  %2111 = vperm.xlu0 %2110, %v65
  %v2112 = vpop.permute.xlu0 %2111
  %2114 = vset.pattern.permute.xlu0 1
  %2115 = vperm.xlu0 %2114, %v66
  %v2116 = vpop.permute.xlu0 %2115
  %2118 = vset.pattern.permute.xlu0 1
  %2119 = vperm.xlu0 %2118, %v67
  %v2120 = vpop.permute.xlu0 %2119
  %v2122 = vlaneseq
  %v2123 = vshrl.u32 %v2122, 7
  %v2124 = vsub.s32 4, %v2123
  %v2125 = vrot.slane %v78, %v2124
  %v2126 = vmul.f32 %v2060, %v2125
  %v2127 = vmul.f32 %v2064, %v2125
  %v2128 = vmul.f32 %v2068, %v2125
  %v2129 = vmul.f32 %v2072, %v2125
  %v2130 = vmul.f32 %v2076, %v2125
  %v2131 = vmul.f32 %v2080, %v2125
  %v2132 = vmul.f32 %v2084, %v2125
  %v2133 = vmul.f32 %v2088, %v2125
  %v2134 = vmul.f32 %v2092, %v2125
  %v2135 = vmul.f32 %v2096, %v2125
  %v2136 = vmul.f32 %v2100, %v2125
  %v2137 = vmul.f32 %v2104, %v2125
  %v2138 = vmul.f32 %v2108, %v2125
  %v2139 = vmul.f32 %v2112, %v2125
  %v2140 = vmul.f32 %v2116, %v2125
  %v2141 = vmul.f32 %v2120, %v2125
  %v2142 = vadd.f32 %v2042, %v2126
  %v2143 = vadd.f32 %v2043, %v2127
  %v2144 = vadd.f32 %v2044, %v2128
  %v2145 = vadd.f32 %v2045, %v2129
  %v2146 = vadd.f32 %v2046, %v2130
  %v2147 = vadd.f32 %v2047, %v2131
  %v2148 = vadd.f32 %v2048, %v2132
  %v2149 = vadd.f32 %v2049, %v2133
  %v2150 = vadd.f32 %v2050, %v2134
  %v2151 = vadd.f32 %v2051, %v2135
  %v2152 = vadd.f32 %v2052, %v2136
  %v2153 = vadd.f32 %v2053, %v2137
  %v2154 = vadd.f32 %v2054, %v2138
  %v2155 = vadd.f32 %v2055, %v2139
  %v2156 = vadd.f32 %v2056, %v2140
  %v2157 = vadd.f32 %v2057, %v2141
  %2158 = vset.pattern.permute.xlu0 2
  %2159 = vperm.xlu0 %2158, %v52
  %v2160 = vpop.permute.xlu0 %2159
  %2162 = vset.pattern.permute.xlu0 2
  %2163 = vperm.xlu0 %2162, %v53
  %v2164 = vpop.permute.xlu0 %2163
  %2166 = vset.pattern.permute.xlu0 2
  %2167 = vperm.xlu0 %2166, %v54
  %v2168 = vpop.permute.xlu0 %2167
  %2170 = vset.pattern.permute.xlu0 2
  %2171 = vperm.xlu0 %2170, %v55
  %v2172 = vpop.permute.xlu0 %2171
  %2174 = vset.pattern.permute.xlu0 2
  %2175 = vperm.xlu0 %2174, %v56
  %v2176 = vpop.permute.xlu0 %2175
  %2178 = vset.pattern.permute.xlu0 2
  %2179 = vperm.xlu0 %2178, %v57
  %v2180 = vpop.permute.xlu0 %2179
  %2182 = vset.pattern.permute.xlu0 2
  %2183 = vperm.xlu0 %2182, %v58
  %v2184 = vpop.permute.xlu0 %2183
  %2186 = vset.pattern.permute.xlu0 2
  %2187 = vperm.xlu0 %2186, %v59
  %v2188 = vpop.permute.xlu0 %2187
  %2190 = vset.pattern.permute.xlu0 2
  %2191 = vperm.xlu0 %2190, %v60
  %v2192 = vpop.permute.xlu0 %2191
  %2194 = vset.pattern.permute.xlu0 2
  %2195 = vperm.xlu0 %2194, %v61
  %v2196 = vpop.permute.xlu0 %2195
  %2198 = vset.pattern.permute.xlu0 2
  %2199 = vperm.xlu0 %2198, %v62
  %v2200 = vpop.permute.xlu0 %2199
  %2202 = vset.pattern.permute.xlu0 2
  %2203 = vperm.xlu0 %2202, %v63
  %v2204 = vpop.permute.xlu0 %2203
  %2206 = vset.pattern.permute.xlu0 2
  %2207 = vperm.xlu0 %2206, %v64
  %v2208 = vpop.permute.xlu0 %2207
  %2210 = vset.pattern.permute.xlu0 2
  %2211 = vperm.xlu0 %2210, %v65
  %v2212 = vpop.permute.xlu0 %2211
  %2214 = vset.pattern.permute.xlu0 2
  %2215 = vperm.xlu0 %2214, %v66
  %v2216 = vpop.permute.xlu0 %2215
  %2218 = vset.pattern.permute.xlu0 2
  %2219 = vperm.xlu0 %2218, %v67
  %v2220 = vpop.permute.xlu0 %2219
  %v2222 = vlaneseq
  %v2223 = vshrl.u32 %v2222, 7
  %v2224 = vsub.s32 5, %v2223
  %v2225 = vrot.slane %v78, %v2224
  %v2226 = vmul.f32 %v2160, %v2225
  %v2227 = vmul.f32 %v2164, %v2225
  %v2228 = vmul.f32 %v2168, %v2225
  %v2229 = vmul.f32 %v2172, %v2225
  %v2230 = vmul.f32 %v2176, %v2225
  %v2231 = vmul.f32 %v2180, %v2225
  %v2232 = vmul.f32 %v2184, %v2225
  %v2233 = vmul.f32 %v2188, %v2225
  %v2234 = vmul.f32 %v2192, %v2225
  %v2235 = vmul.f32 %v2196, %v2225
  %v2236 = vmul.f32 %v2200, %v2225
  %v2237 = vmul.f32 %v2204, %v2225
  %v2238 = vmul.f32 %v2208, %v2225
  %v2239 = vmul.f32 %v2212, %v2225
  %v2240 = vmul.f32 %v2216, %v2225
  %v2241 = vmul.f32 %v2220, %v2225
  %v2242 = vadd.f32 %v2142, %v2226
  %v2243 = vadd.f32 %v2143, %v2227
  %v2244 = vadd.f32 %v2144, %v2228
  %v2245 = vadd.f32 %v2145, %v2229
  %v2246 = vadd.f32 %v2146, %v2230
  %v2247 = vadd.f32 %v2147, %v2231
  %v2248 = vadd.f32 %v2148, %v2232
  %v2249 = vadd.f32 %v2149, %v2233
  %v2250 = vadd.f32 %v2150, %v2234
  %v2251 = vadd.f32 %v2151, %v2235
  %v2252 = vadd.f32 %v2152, %v2236
  %v2253 = vadd.f32 %v2153, %v2237
  %v2254 = vadd.f32 %v2154, %v2238
  %v2255 = vadd.f32 %v2155, %v2239
  %v2256 = vadd.f32 %v2156, %v2240
  %v2257 = vadd.f32 %v2157, %v2241
  %v2258 = vadd.f32 %v1942, %v2242
  %v2259 = vadd.f32 %v1943, %v2243
  %v2260 = vadd.f32 %v1944, %v2244
  %v2261 = vadd.f32 %v1945, %v2245
  %v2262 = vadd.f32 %v1946, %v2246
  %v2263 = vadd.f32 %v1947, %v2247
  %v2264 = vadd.f32 %v1948, %v2248
  %v2265 = vadd.f32 %v1949, %v2249
  %v2266 = vadd.f32 %v1950, %v2250
  %v2267 = vadd.f32 %v1951, %v2251
  %v2268 = vadd.f32 %v1952, %v2252
  %v2269 = vadd.f32 %v1953, %v2253
  %v2270 = vadd.f32 %v1954, %v2254
  %v2271 = vadd.f32 %v1955, %v2255
  %v2272 = vadd.f32 %v1956, %v2256
  %v2273 = vadd.f32 %v1957, %v2257
  %2274 = vset.pattern.permute.xlu0 3
  %2275 = vperm.xlu0 %2274, %v52
  %v2276 = vpop.permute.xlu0 %2275
  %2278 = vset.pattern.permute.xlu0 3
  %2279 = vperm.xlu0 %2278, %v53
  %v2280 = vpop.permute.xlu0 %2279
  %2282 = vset.pattern.permute.xlu0 3
  %2283 = vperm.xlu0 %2282, %v54
  %v2284 = vpop.permute.xlu0 %2283
  %2286 = vset.pattern.permute.xlu0 3
  %2287 = vperm.xlu0 %2286, %v55
  %v2288 = vpop.permute.xlu0 %2287
  %2290 = vset.pattern.permute.xlu0 3
  %2291 = vperm.xlu0 %2290, %v56
  %v2292 = vpop.permute.xlu0 %2291
  %2294 = vset.pattern.permute.xlu0 3
  %2295 = vperm.xlu0 %2294, %v57
  %v2296 = vpop.permute.xlu0 %2295
  %2298 = vset.pattern.permute.xlu0 3
  %2299 = vperm.xlu0 %2298, %v58
  %v2300 = vpop.permute.xlu0 %2299
  %2302 = vset.pattern.permute.xlu0 3
  %2303 = vperm.xlu0 %2302, %v59
  %v2304 = vpop.permute.xlu0 %2303
  %2306 = vset.pattern.permute.xlu0 3
  %2307 = vperm.xlu0 %2306, %v60
  %v2308 = vpop.permute.xlu0 %2307
  %2310 = vset.pattern.permute.xlu0 3
  %2311 = vperm.xlu0 %2310, %v61
  %v2312 = vpop.permute.xlu0 %2311
  %2314 = vset.pattern.permute.xlu0 3
  %2315 = vperm.xlu0 %2314, %v62
  %v2316 = vpop.permute.xlu0 %2315
  %2318 = vset.pattern.permute.xlu0 3
  %2319 = vperm.xlu0 %2318, %v63
  %v2320 = vpop.permute.xlu0 %2319
  %2322 = vset.pattern.permute.xlu0 3
  %2323 = vperm.xlu0 %2322, %v64
  %v2324 = vpop.permute.xlu0 %2323
  %2326 = vset.pattern.permute.xlu0 3
  %2327 = vperm.xlu0 %2326, %v65
  %v2328 = vpop.permute.xlu0 %2327
  %2330 = vset.pattern.permute.xlu0 3
  %2331 = vperm.xlu0 %2330, %v66
  %v2332 = vpop.permute.xlu0 %2331
  %2334 = vset.pattern.permute.xlu0 3
  %2335 = vperm.xlu0 %2334, %v67
  %v2336 = vpop.permute.xlu0 %2335
  %v2338 = vlaneseq
  %v2339 = vshrl.u32 %v2338, 7
  %v2340 = vsub.s32 6, %v2339
  %v2341 = vrot.slane %v78, %v2340
  %v2342 = vmul.f32 %v2276, %v2341
  %v2343 = vmul.f32 %v2280, %v2341
  %v2344 = vmul.f32 %v2284, %v2341
  %v2345 = vmul.f32 %v2288, %v2341
  %v2346 = vmul.f32 %v2292, %v2341
  %v2347 = vmul.f32 %v2296, %v2341
  %v2348 = vmul.f32 %v2300, %v2341
  %v2349 = vmul.f32 %v2304, %v2341
  %v2350 = vmul.f32 %v2308, %v2341
  %v2351 = vmul.f32 %v2312, %v2341
  %v2352 = vmul.f32 %v2316, %v2341
  %v2353 = vmul.f32 %v2320, %v2341
  %v2354 = vmul.f32 %v2324, %v2341
  %v2355 = vmul.f32 %v2328, %v2341
  %v2356 = vmul.f32 %v2332, %v2341
  %v2357 = vmul.f32 %v2336, %v2341
  %v2358 = vadd.f32 %v2258, %v2342
  %v2359 = vadd.f32 %v2259, %v2343
  %v2360 = vadd.f32 %v2260, %v2344
  %v2361 = vadd.f32 %v2261, %v2345
  %v2362 = vadd.f32 %v2262, %v2346
  %v2363 = vadd.f32 %v2263, %v2347
  %v2364 = vadd.f32 %v2264, %v2348
  %v2365 = vadd.f32 %v2265, %v2349
  %v2366 = vadd.f32 %v2266, %v2350
  %v2367 = vadd.f32 %v2267, %v2351
  %v2368 = vadd.f32 %v2268, %v2352
  %v2369 = vadd.f32 %v2269, %v2353
  %v2370 = vadd.f32 %v2270, %v2354
  %v2371 = vadd.f32 %v2271, %v2355
  %v2372 = vadd.f32 %v2272, %v2356
  %v2373 = vadd.f32 %v2273, %v2357
  %v2374 = vlaneseq
  %v2375 = vshrl.u32 %v2374, 7
  %v2376 = vsub.s32 0, %v2375
  %v2377 = vrot.slane %v91, %v2376
  %v2378 = vadd.f32 %v2358, %v2377
  %v2379 = vadd.f32 %v2359, %v2377
  %v2380 = vadd.f32 %v2360, %v2377
  %v2381 = vadd.f32 %v2361, %v2377
  %v2382 = vadd.f32 %v2362, %v2377
  %v2383 = vadd.f32 %v2363, %v2377
  %v2384 = vadd.f32 %v2364, %v2377
  %v2385 = vadd.f32 %v2365, %v2377
  %v2386 = vadd.f32 %v2366, %v2377
  %v2387 = vadd.f32 %v2367, %v2377
  %v2388 = vadd.f32 %v2368, %v2377
  %v2389 = vadd.f32 %v2369, %v2377
  %v2390 = vadd.f32 %v2370, %v2377
  %v2391 = vadd.f32 %v2371, %v2377
  %v2392 = vadd.f32 %v2372, %v2377
  %v2393 = vadd.f32 %v2373, %v2377
  %v2394 = vmax.f32 %v2378, 0.0
  %v2395 = vmax.f32 %v2379, 0.0
  %v2396 = vmax.f32 %v2380, 0.0
  %v2397 = vmax.f32 %v2381, 0.0
  %v2398 = vmax.f32 %v2382, 0.0
  %v2399 = vmax.f32 %v2383, 0.0
  %v2400 = vmax.f32 %v2384, 0.0
  %v2401 = vmax.f32 %v2385, 0.0
  %v2402 = vmax.f32 %v2386, 0.0
  %v2403 = vmax.f32 %v2387, 0.0
  %v2404 = vmax.f32 %v2388, 0.0
  %v2405 = vmax.f32 %v2389, 0.0
  %v2406 = vmax.f32 %v2390, 0.0
  %v2407 = vmax.f32 %v2391, 0.0
  %v2408 = vmax.f32 %v2392, 0.0
  %v2409 = vmax.f32 %v2393, 0.0
  %v2410 = vlaneseq
  %v2411 = vshrl.u32 %v2410, 7
  %v2412 = vsub.s32 0, %v2411
  %v2413 = vrot.slane %v92, %v2412
  %v2415 = vsel %vm444, %v2394, 0
  %v2418 = vsel %vm444, %v2395, 0
  %v2421 = vsel %vm444, %v2396, 0
  %v2424 = vsel %vm444, %v2397, 0
  %v2427 = vsel %vm444, %v2398, 0
  %v2430 = vsel %vm444, %v2399, 0
  %v2433 = vsel %vm444, %v2400, 0
  %v2436 = vsel %vm444, %v2401, 0
  %v2439 = vsel %vm444, %v2402, 0
  %v2442 = vsel %vm444, %v2403, 0
  %v2445 = vsel %vm444, %v2404, 0
  %v2448 = vsel %vm444, %v2405, 0
  %v2451 = vsel %vm444, %v2406, 0
  %v2454 = vsel %vm444, %v2407, 0
  %v2457 = vsel %vm444, %v2408, 0
  %v2460 = vsel %vm444, %v2409, 0
  %2462 = vmatprep.subr.mxu0 0.0
  %2463 = vmatpush1.msra.mxu0 %v80
  %2464 = vmatprep.subr.mxu0 0.0
  %2465 = vmatpush1.msra.mxu0 %v81
  %2466 = vmatprep.subr.mxu0 0.0
  %2467 = vmatpush1.msra.mxu0 %v82
  %2468 = vmatprep.subr.mxu0 0.0
  %2469 = vmatpush1.msra.mxu0 %v83
  %2470 = vmatprep.subr.mxu0 0.0
  %2471 = vmatpush1.msra.mxu0 0.0
  %2472 = vmatprep.subr.mxu0 0.0
  %2473 = vmatpush1.msra.mxu0 0.0
  %2474 = vmatprep.subr.mxu0 0.0
  %2475 = vmatpush1.msra.mxu0 0.0
  %2476 = vmatprep.subr.mxu0 0.0
  %2477 = vmatpush1.msra.mxu0 0.0
  %2478 = vmatprep.subr.mxu0 0.0
  %2479 = vmatpush1.msra.mxu0 0.0
  %2480 = vmatprep.subr.mxu0 0.0
  %2481 = vmatpush1.msra.mxu0 0.0
  %2482 = vmatprep.subr.mxu0 0.0
  %2483 = vmatpush1.msra.mxu0 0.0
  %2484 = vmatprep.subr.mxu0 0.0
  %2485 = vmatpush1.msra.mxu0 0.0
  %2486 = vmatprep.subr.mxu0 0.0
  %2487 = vmatpush1.msra.mxu0 0.0
  %2488 = vmatprep.subr.mxu0 0.0
  %2489 = vmatpush1.msra.mxu0 0.0
  %2490 = vmatprep.subr.mxu0 0.0
  %2491 = vmatpush1.msra.mxu0 0.0
  %2492 = vmatprep.subr.mxu0 0.0
  %2493 = vmatpush1.msra.mxu0 0.0
  %2494 = vmatprep.subr.mxu0 0.0
  %2495 = vmatpush1.msra.mxu0 0.0
  %2496 = vmatprep.subr.mxu0 0.0
  %2497 = vmatpush1.msra.mxu0 0.0
  %2498 = vmatprep.subr.mxu0 0.0
  %2499 = vmatpush1.msra.mxu0 0.0
  %2500 = vmatprep.subr.mxu0 0.0
  %2501 = vmatpush1.msra.mxu0 0.0
  %2502 = vmatprep.subr.mxu0 0.0
  %2503 = vmatpush1.msra.mxu0 0.0
  %2504 = vmatprep.subr.mxu0 0.0
  %2505 = vmatpush1.msra.mxu0 0.0
  %2506 = vmatprep.subr.mxu0 0.0
  %2507 = vmatpush1.msra.mxu0 0.0
  %2508 = vmatprep.subr.mxu0 0.0
  %2509 = vmatpush1.msra.mxu0 0.0
  %2510 = vmatprep.subr.mxu0 0.0
  %2511 = vmatpush1.msra.mxu0 0.0
  %2512 = vmatprep.subr.mxu0 0.0
  %2513 = vmatpush1.msra.mxu0 0.0
  %2514 = vmatprep.subr.mxu0 0.0
  %2515 = vmatpush1.msra.mxu0 0.0
  %2516 = vmatprep.subr.mxu0 0.0
  %2517 = vmatpush1.msra.mxu0 0.0
  %2518 = vmatprep.subr.mxu0 0.0
  %2519 = vmatpush1.msra.mxu0 0.0
  %2520 = vmatprep.subr.mxu0 0.0
  %2521 = vmatpush1.msra.mxu0 0.0
  %2522 = vmatprep.subr.mxu0 0.0
  %2523 = vmatpush1.msra.mxu0 0.0
  %2524 = vmatprep.subr.mxu0 0.0
  %2525 = vmatpush1.msra.mxu0 0.0
  %2526 = vmatprep.mubr.f32.mxu0 0.0
  %2527 = vmatmul.mubr.f32.gmra.mrb[0].mxu0 %v2415
  %v2528 = vpop.f32.mrb[0].mxu0
  %v2529 = vadd.f32 %v2413, %v2528
  %v2530 = vpop.f32.mrb[0].mxu0
  %2531 = vmatprep.mubr.f32.mxu0 0.0
  %2532 = vmatmul.mubr.f32.gmra.mrb[0].mxu0 %v2418
  %v2533 = vpop.f32.mrb[0].mxu0
  %v2534 = vadd.f32 %v2413, %v2533
  %v2535 = vpop.f32.mrb[0].mxu0
  %2536 = vmatprep.mubr.f32.mxu0 0.0
  %2537 = vmatmul.mubr.f32.gmra.mrb[0].mxu0 %v2421
  %v2538 = vpop.f32.mrb[0].mxu0
  %v2539 = vadd.f32 %v2413, %v2538
  %v2540 = vpop.f32.mrb[0].mxu0
  %2541 = vmatprep.mubr.f32.mxu0 0.0
  %2542 = vmatmul.mubr.f32.gmra.mrb[0].mxu0 %v2424
  %v2543 = vpop.f32.mrb[0].mxu0
  %v2544 = vadd.f32 %v2413, %v2543
  %v2545 = vpop.f32.mrb[0].mxu0
  %2546 = vmatprep.mubr.f32.mxu0 0.0
  %2547 = vmatmul.mubr.f32.gmra.mrb[0].mxu0 %v2427
  %v2548 = vpop.f32.mrb[0].mxu0
  %v2549 = vadd.f32 %v2413, %v2548
  %v2550 = vpop.f32.mrb[0].mxu0
  %2551 = vmatprep.mubr.f32.mxu0 0.0
  %2552 = vmatmul.mubr.f32.gmra.mrb[0].mxu0 %v2430
  %v2553 = vpop.f32.mrb[0].mxu0
  %v2554 = vadd.f32 %v2413, %v2553
  %v2555 = vpop.f32.mrb[0].mxu0
  %2556 = vmatprep.mubr.f32.mxu0 0.0
  %2557 = vmatmul.mubr.f32.gmra.mrb[0].mxu0 %v2433
  %v2558 = vpop.f32.mrb[0].mxu0
  %v2559 = vadd.f32 %v2413, %v2558
  %v2560 = vpop.f32.mrb[0].mxu0
  %2561 = vmatprep.mubr.f32.mxu0 0.0
  %2562 = vmatmul.mubr.f32.gmra.mrb[0].mxu0 %v2436
  %v2563 = vpop.f32.mrb[0].mxu0
  %v2564 = vadd.f32 %v2413, %v2563
  %v2565 = vpop.f32.mrb[0].mxu0
  %2566 = vmatprep.mubr.f32.mxu0 0.0
  %2567 = vmatmul.mubr.f32.gmra.mrb[0].mxu0 %v2439
  %v2568 = vpop.f32.mrb[0].mxu0
  %v2569 = vadd.f32 %v2413, %v2568
  %v2570 = vpop.f32.mrb[0].mxu0
  %2571 = vmatprep.mubr.f32.mxu0 0.0
  %2572 = vmatmul.mubr.f32.gmra.mrb[0].mxu0 %v2442
  %v2573 = vpop.f32.mrb[0].mxu0
  %v2574 = vadd.f32 %v2413, %v2573
  %v2575 = vpop.f32.mrb[0].mxu0
  %2576 = vmatprep.mubr.f32.mxu0 0.0
  %2577 = vmatmul.mubr.f32.gmra.mrb[0].mxu0 %v2445
  %v2578 = vpop.f32.mrb[0].mxu0
  %v2579 = vadd.f32 %v2413, %v2578
  %v2580 = vpop.f32.mrb[0].mxu0
  %2581 = vmatprep.mubr.f32.mxu0 0.0
  %2582 = vmatmul.mubr.f32.gmra.mrb[0].mxu0 %v2448
  %v2583 = vpop.f32.mrb[0].mxu0
  %v2584 = vadd.f32 %v2413, %v2583
  %v2585 = vpop.f32.mrb[0].mxu0
  %2586 = vmatprep.mubr.f32.mxu0 0.0
  %2587 = vmatmul.mubr.f32.gmra.mrb[0].mxu0 %v2451
  %v2588 = vpop.f32.mrb[0].mxu0
  %v2589 = vadd.f32 %v2413, %v2588
  %v2590 = vpop.f32.mrb[0].mxu0
  %2591 = vmatprep.mubr.f32.mxu0 0.0
  %2592 = vmatmul.mubr.f32.gmra.mrb[0].mxu0 %v2454
  %v2593 = vpop.f32.mrb[0].mxu0
  %v2594 = vadd.f32 %v2413, %v2593
  %v2595 = vpop.f32.mrb[0].mxu0
  %2596 = vmatprep.mubr.f32.mxu0 0.0
  %2597 = vmatmul.mubr.f32.gmra.mrb[0].mxu0 %v2457
  %v2598 = vpop.f32.mrb[0].mxu0
  %v2599 = vadd.f32 %v2413, %v2598
  %v2600 = vpop.f32.mrb[0].mxu0
  %2601 = vmatprep.mubr.f32.mxu0 0.0
  %2602 = vmatmul.mubr.f32.gmra.mrb[0].mxu0 %v2460
  %v2603 = vpop.f32.mrb[0].mxu0
  %v2604 = vadd.f32 %v2413, %v2603
  %v2605 = vpop.f32.mrb[0].mxu0
  %2606 = vdwg.mxu0
  %v2607 = vsel %vm444, %v2529, -inf
  %v2608 = vsel %vm444, %v2534, -inf
  %v2609 = vsel %vm444, %v2539, -inf
  %v2610 = vmax.f32 %v2607, %v2609
  %v2611 = vsel %vm444, %v2544, -inf
  %v2612 = vmax.f32 %v2608, %v2611
  %v2613 = vsel %vm444, %v2549, -inf
  %v2614 = vmax.f32 %v2610, %v2613
  %v2615 = vsel %vm444, %v2554, -inf
  %v2616 = vmax.f32 %v2612, %v2615
  %v2617 = vsel %vm444, %v2559, -inf
  %v2618 = vmax.f32 %v2614, %v2617
  %v2619 = vsel %vm444, %v2564, -inf
  %v2620 = vmax.f32 %v2616, %v2619
  %v2621 = vmax.f32 %v2618, %v2620
  %v2622 = vrot.slane %v2621, 4
  %v2623 = vmax.f32 %v2621, %v2622
  %v2624 = vrot.slane %v2623, 2
  %v2625 = vmax.f32 %v2623, %v2624
  %v2626 = vrot.slane %v2625, 1
  %v2627 = vmax.f32 %v2625, %v2626
  %v2628 = vsel %vm444, %v2569, -inf
  %v2629 = vsel %vm444, %v2574, -inf
  %v2630 = vsel %vm444, %v2579, -inf
  %v2631 = vmax.f32 %v2628, %v2630
  %v2632 = vsel %vm444, %v2584, -inf
  %v2633 = vmax.f32 %v2629, %v2632
  %v2634 = vsel %vm444, %v2589, -inf
  %v2635 = vmax.f32 %v2631, %v2634
  %v2636 = vsel %vm444, %v2594, -inf
  %v2637 = vmax.f32 %v2633, %v2636
  %v2638 = vsel %vm444, %v2599, -inf
  %v2639 = vmax.f32 %v2635, %v2638
  %v2640 = vsel %vm444, %v2604, -inf
  %v2641 = vmax.f32 %v2637, %v2640
  %v2642 = vmax.f32 %v2639, %v2641
  %v2643 = vrot.slane %v2642, 4
  %v2644 = vmax.f32 %v2642, %v2643
  %v2645 = vrot.slane %v2644, 2
  %v2646 = vmax.f32 %v2644, %v2645
  %v2647 = vrot.slane %v2646, 1
  %v2648 = vmax.f32 %v2646, %v2647
  %v2651 = vsel %vm682, %v2648, %v2627
  %v2652 = vsel %vm444, %v2651, 0
  %2654 = vmatprep.subr.mxu0 0.0
  %2655 = vmatpush1.msra.mxu0 %v84
  %2656 = vmatprep.subr.mxu0 0.0
  %2657 = vmatpush1.msra.mxu0 %v85
  %2658 = vmatprep.subr.mxu0 0.0
  %2659 = vmatpush1.msra.mxu0 %v86
  %2660 = vmatprep.subr.mxu0 0.0
  %2661 = vmatpush1.msra.mxu0 %v87
  %2662 = vmatprep.subr.mxu0 0.0
  %2663 = vmatpush1.msra.mxu0 0.0
  %2664 = vmatprep.subr.mxu0 0.0
  %2665 = vmatpush1.msra.mxu0 0.0
  %2666 = vmatprep.subr.mxu0 0.0
  %2667 = vmatpush1.msra.mxu0 0.0
  %2668 = vmatprep.subr.mxu0 0.0
  %2669 = vmatpush1.msra.mxu0 0.0
  %2670 = vmatprep.subr.mxu0 0.0
  %2671 = vmatpush1.msra.mxu0 0.0
  %2672 = vmatprep.subr.mxu0 0.0
  %2673 = vmatpush1.msra.mxu0 0.0
  %2674 = vmatprep.subr.mxu0 0.0
  %2675 = vmatpush1.msra.mxu0 0.0
  %2676 = vmatprep.subr.mxu0 0.0
  %2677 = vmatpush1.msra.mxu0 0.0
  %2678 = vmatprep.subr.mxu0 0.0
  %2679 = vmatpush1.msra.mxu0 0.0
  %2680 = vmatprep.subr.mxu0 0.0
  %2681 = vmatpush1.msra.mxu0 0.0
  %2682 = vmatprep.subr.mxu0 0.0
  %2683 = vmatpush1.msra.mxu0 0.0
  %2684 = vmatprep.subr.mxu0 0.0
  %2685 = vmatpush1.msra.mxu0 0.0
  %2686 = vmatprep.subr.mxu0 0.0
  %2687 = vmatpush1.msra.mxu0 0.0
  %2688 = vmatprep.subr.mxu0 0.0
  %2689 = vmatpush1.msra.mxu0 0.0
  %2690 = vmatprep.subr.mxu0 0.0
  %2691 = vmatpush1.msra.mxu0 0.0
  %2692 = vmatprep.subr.mxu0 0.0
  %2693 = vmatpush1.msra.mxu0 0.0
  %2694 = vmatprep.subr.mxu0 0.0
  %2695 = vmatpush1.msra.mxu0 0.0
  %2696 = vmatprep.subr.mxu0 0.0
  %2697 = vmatpush1.msra.mxu0 0.0
  %2698 = vmatprep.subr.mxu0 0.0
  %2699 = vmatpush1.msra.mxu0 0.0
  %2700 = vmatprep.subr.mxu0 0.0
  %2701 = vmatpush1.msra.mxu0 0.0
  %2702 = vmatprep.subr.mxu0 0.0
  %2703 = vmatpush1.msra.mxu0 0.0
  %2704 = vmatprep.subr.mxu0 0.0
  %2705 = vmatpush1.msra.mxu0 0.0
  %2706 = vmatprep.subr.mxu0 0.0
  %2707 = vmatpush1.msra.mxu0 0.0
  %2708 = vmatprep.subr.mxu0 0.0
  %2709 = vmatpush1.msra.mxu0 0.0
  %2710 = vmatprep.subr.mxu0 0.0
  %2711 = vmatpush1.msra.mxu0 0.0
  %2712 = vmatprep.subr.mxu0 0.0
  %2713 = vmatpush1.msra.mxu0 0.0
  %2714 = vmatprep.subr.mxu0 0.0
  %2715 = vmatpush1.msra.mxu0 0.0
  %2716 = vmatprep.subr.mxu0 0.0
  %2717 = vmatpush1.msra.mxu0 0.0
  %2718 = vmatprep.mubr.f32.mxu0 0.0
  %2719 = vmatmul.mubr.f32.gmra.mrb[0].mxu0 %v2652
  %v2720 = vpop.f32.mrb[0].mxu0
  %v2721 = vadd.f32 0.0, %v2720
  %v2722 = vpop.f32.mrb[0].mxu0
  %2723 = vdwg.mxu0
  %2725 = vset.pattern.permute.xlu0 0
  %2726 = vperm.xlu0 %2725, %v1626
  %v2727 = vpop.permute.xlu0 %2726
  %2730 = vset.pattern.permute.xlu0 0
  %2731 = vperm.xlu0 %2730, %v1627
  %v2732 = vpop.permute.xlu0 %2731
  %2735 = vset.pattern.permute.xlu0 0
  %2736 = vperm.xlu0 %2735, %v1628
  %v2737 = vpop.permute.xlu0 %2736
  %2740 = vset.pattern.permute.xlu0 0
  %2741 = vperm.xlu0 %2740, %v1629
  %v2742 = vpop.permute.xlu0 %2741
  %2745 = vset.pattern.permute.xlu0 0
  %2746 = vperm.xlu0 %2745, %v1630
  %v2747 = vpop.permute.xlu0 %2746
  %2750 = vset.pattern.permute.xlu0 0
  %2751 = vperm.xlu0 %2750, %v1631
  %v2752 = vpop.permute.xlu0 %2751
  %2755 = vset.pattern.permute.xlu0 0
  %2756 = vperm.xlu0 %2755, %v1632
  %v2757 = vpop.permute.xlu0 %2756
  %2760 = vset.pattern.permute.xlu0 0
  %2761 = vperm.xlu0 %2760, %v1633
  %v2762 = vpop.permute.xlu0 %2761
  %2765 = vset.pattern.permute.xlu0 0
  %2766 = vperm.xlu0 %2765, %v1634
  %v2767 = vpop.permute.xlu0 %2766
  %2770 = vset.pattern.permute.xlu0 0
  %2771 = vperm.xlu0 %2770, %v1635
  %v2772 = vpop.permute.xlu0 %2771
  %2775 = vset.pattern.permute.xlu0 0
  %2776 = vperm.xlu0 %2775, %v1636
  %v2777 = vpop.permute.xlu0 %2776
  %2780 = vset.pattern.permute.xlu0 0
  %2781 = vperm.xlu0 %2780, %v1637
  %v2782 = vpop.permute.xlu0 %2781
  %2785 = vset.pattern.permute.xlu0 0
  %2786 = vperm.xlu0 %2785, %v1638
  %v2787 = vpop.permute.xlu0 %2786
  %2790 = vset.pattern.permute.xlu0 0
  %2791 = vperm.xlu0 %2790, %v1639
  %v2792 = vpop.permute.xlu0 %2791
  %2795 = vset.pattern.permute.xlu0 0
  %2796 = vperm.xlu0 %2795, %v1640
  %v2797 = vpop.permute.xlu0 %2796
  %2800 = vset.pattern.permute.xlu0 0
  %2801 = vperm.xlu0 %2800, %v1641
  %v2802 = vpop.permute.xlu0 %2801
  %v2804 = vlaneseq
  %v2805 = vshrl.u32 %v2804, 7
  %v2806 = vsub.s32 0, %v2805
  %v2807 = vrot.slane %v79, %v2806
  %v2808 = vmul.f32 %v2727, %v2807
  %v2809 = vmul.f32 %v2732, %v2807
  %v2810 = vmul.f32 %v2737, %v2807
  %v2811 = vmul.f32 %v2742, %v2807
  %v2812 = vmul.f32 %v2747, %v2807
  %v2813 = vmul.f32 %v2752, %v2807
  %v2814 = vmul.f32 %v2757, %v2807
  %v2815 = vmul.f32 %v2762, %v2807
  %v2816 = vmul.f32 %v2767, %v2807
  %v2817 = vmul.f32 %v2772, %v2807
  %v2818 = vmul.f32 %v2777, %v2807
  %v2819 = vmul.f32 %v2782, %v2807
  %v2820 = vmul.f32 %v2787, %v2807
  %v2821 = vmul.f32 %v2792, %v2807
  %v2822 = vmul.f32 %v2797, %v2807
  %v2823 = vmul.f32 %v2802, %v2807
  %2824 = vset.pattern.permute.xlu0 1
  %2825 = vperm.xlu0 %2824, %v1626
  %v2826 = vpop.permute.xlu0 %2825
  %2828 = vset.pattern.permute.xlu0 1
  %2829 = vperm.xlu0 %2828, %v1627
  %v2830 = vpop.permute.xlu0 %2829
  %2832 = vset.pattern.permute.xlu0 1
  %2833 = vperm.xlu0 %2832, %v1628
  %v2834 = vpop.permute.xlu0 %2833
  %2836 = vset.pattern.permute.xlu0 1
  %2837 = vperm.xlu0 %2836, %v1629
  %v2838 = vpop.permute.xlu0 %2837
  %2840 = vset.pattern.permute.xlu0 1
  %2841 = vperm.xlu0 %2840, %v1630
  %v2842 = vpop.permute.xlu0 %2841
  %2844 = vset.pattern.permute.xlu0 1
  %2845 = vperm.xlu0 %2844, %v1631
  %v2846 = vpop.permute.xlu0 %2845
  %2848 = vset.pattern.permute.xlu0 1
  %2849 = vperm.xlu0 %2848, %v1632
  %v2850 = vpop.permute.xlu0 %2849
  %2852 = vset.pattern.permute.xlu0 1
  %2853 = vperm.xlu0 %2852, %v1633
  %v2854 = vpop.permute.xlu0 %2853
  %2856 = vset.pattern.permute.xlu0 1
  %2857 = vperm.xlu0 %2856, %v1634
  %v2858 = vpop.permute.xlu0 %2857
  %2860 = vset.pattern.permute.xlu0 1
  %2861 = vperm.xlu0 %2860, %v1635
  %v2862 = vpop.permute.xlu0 %2861
  %2864 = vset.pattern.permute.xlu0 1
  %2865 = vperm.xlu0 %2864, %v1636
  %v2866 = vpop.permute.xlu0 %2865
  %2868 = vset.pattern.permute.xlu0 1
  %2869 = vperm.xlu0 %2868, %v1637
  %v2870 = vpop.permute.xlu0 %2869
  %2872 = vset.pattern.permute.xlu0 1
  %2873 = vperm.xlu0 %2872, %v1638
  %v2874 = vpop.permute.xlu0 %2873
  %2876 = vset.pattern.permute.xlu0 1
  %2877 = vperm.xlu0 %2876, %v1639
  %v2878 = vpop.permute.xlu0 %2877
  %2880 = vset.pattern.permute.xlu0 1
  %2881 = vperm.xlu0 %2880, %v1640
  %v2882 = vpop.permute.xlu0 %2881
  %2884 = vset.pattern.permute.xlu0 1
  %2885 = vperm.xlu0 %2884, %v1641
  %v2886 = vpop.permute.xlu0 %2885
  %v2888 = vlaneseq
  %v2889 = vshrl.u32 %v2888, 7
  %v2890 = vsub.s32 1, %v2889
  %v2891 = vrot.slane %v79, %v2890
  %v2892 = vmul.f32 %v2826, %v2891
  %v2893 = vmul.f32 %v2830, %v2891
  %v2894 = vmul.f32 %v2834, %v2891
  %v2895 = vmul.f32 %v2838, %v2891
  %v2896 = vmul.f32 %v2842, %v2891
  %v2897 = vmul.f32 %v2846, %v2891
  %v2898 = vmul.f32 %v2850, %v2891
  %v2899 = vmul.f32 %v2854, %v2891
  %v2900 = vmul.f32 %v2858, %v2891
  %v2901 = vmul.f32 %v2862, %v2891
  %v2902 = vmul.f32 %v2866, %v2891
  %v2903 = vmul.f32 %v2870, %v2891
  %v2904 = vmul.f32 %v2874, %v2891
  %v2905 = vmul.f32 %v2878, %v2891
  %v2906 = vmul.f32 %v2882, %v2891
  %v2907 = vmul.f32 %v2886, %v2891
  %v2908 = vadd.f32 %v2808, %v2892
  %v2909 = vadd.f32 %v2809, %v2893
  %v2910 = vadd.f32 %v2810, %v2894
  %v2911 = vadd.f32 %v2811, %v2895
  %v2912 = vadd.f32 %v2812, %v2896
  %v2913 = vadd.f32 %v2813, %v2897
  %v2914 = vadd.f32 %v2814, %v2898
  %v2915 = vadd.f32 %v2815, %v2899
  %v2916 = vadd.f32 %v2816, %v2900
  %v2917 = vadd.f32 %v2817, %v2901
  %v2918 = vadd.f32 %v2818, %v2902
  %v2919 = vadd.f32 %v2819, %v2903
  %v2920 = vadd.f32 %v2820, %v2904
  %v2921 = vadd.f32 %v2821, %v2905
  %v2922 = vadd.f32 %v2822, %v2906
  %v2923 = vadd.f32 %v2823, %v2907
  %2924 = vset.pattern.permute.xlu0 2
  %2925 = vperm.xlu0 %2924, %v1626
  %v2926 = vpop.permute.xlu0 %2925
  %2928 = vset.pattern.permute.xlu0 2
  %2929 = vperm.xlu0 %2928, %v1627
  %v2930 = vpop.permute.xlu0 %2929
  %2932 = vset.pattern.permute.xlu0 2
  %2933 = vperm.xlu0 %2932, %v1628
  %v2934 = vpop.permute.xlu0 %2933
  %2936 = vset.pattern.permute.xlu0 2
  %2937 = vperm.xlu0 %2936, %v1629
  %v2938 = vpop.permute.xlu0 %2937
  %2940 = vset.pattern.permute.xlu0 2
  %2941 = vperm.xlu0 %2940, %v1630
  %v2942 = vpop.permute.xlu0 %2941
  %2944 = vset.pattern.permute.xlu0 2
  %2945 = vperm.xlu0 %2944, %v1631
  %v2946 = vpop.permute.xlu0 %2945
  %2948 = vset.pattern.permute.xlu0 2
  %2949 = vperm.xlu0 %2948, %v1632
  %v2950 = vpop.permute.xlu0 %2949
  %2952 = vset.pattern.permute.xlu0 2
  %2953 = vperm.xlu0 %2952, %v1633
  %v2954 = vpop.permute.xlu0 %2953
  %2956 = vset.pattern.permute.xlu0 2
  %2957 = vperm.xlu0 %2956, %v1634
  %v2958 = vpop.permute.xlu0 %2957
  %2960 = vset.pattern.permute.xlu0 2
  %2961 = vperm.xlu0 %2960, %v1635
  %v2962 = vpop.permute.xlu0 %2961
  %2964 = vset.pattern.permute.xlu0 2
  %2965 = vperm.xlu0 %2964, %v1636
  %v2966 = vpop.permute.xlu0 %2965
  %2968 = vset.pattern.permute.xlu0 2
  %2969 = vperm.xlu0 %2968, %v1637
  %v2970 = vpop.permute.xlu0 %2969
  %2972 = vset.pattern.permute.xlu0 2
  %2973 = vperm.xlu0 %2972, %v1638
  %v2974 = vpop.permute.xlu0 %2973
  %2976 = vset.pattern.permute.xlu0 2
  %2977 = vperm.xlu0 %2976, %v1639
  %v2978 = vpop.permute.xlu0 %2977
  %2980 = vset.pattern.permute.xlu0 2
  %2981 = vperm.xlu0 %2980, %v1640
  %v2982 = vpop.permute.xlu0 %2981
  %2984 = vset.pattern.permute.xlu0 2
  %2985 = vperm.xlu0 %2984, %v1641
  %v2986 = vpop.permute.xlu0 %2985
  %v2988 = vlaneseq
  %v2989 = vshrl.u32 %v2988, 7
  %v2990 = vsub.s32 2, %v2989
  %v2991 = vrot.slane %v79, %v2990
  %v2992 = vmul.f32 %v2926, %v2991
  %v2993 = vmul.f32 %v2930, %v2991
  %v2994 = vmul.f32 %v2934, %v2991
  %v2995 = vmul.f32 %v2938, %v2991
  %v2996 = vmul.f32 %v2942, %v2991
  %v2997 = vmul.f32 %v2946, %v2991
  %v2998 = vmul.f32 %v2950, %v2991
  %v2999 = vmul.f32 %v2954, %v2991
  %v3000 = vmul.f32 %v2958, %v2991
  %v3001 = vmul.f32 %v2962, %v2991
  %v3002 = vmul.f32 %v2966, %v2991
  %v3003 = vmul.f32 %v2970, %v2991
  %v3004 = vmul.f32 %v2974, %v2991
  %v3005 = vmul.f32 %v2978, %v2991
  %v3006 = vmul.f32 %v2982, %v2991
  %v3007 = vmul.f32 %v2986, %v2991
  %v3008 = vadd.f32 %v2908, %v2992
  %v3009 = vadd.f32 %v2909, %v2993
  %v3010 = vadd.f32 %v2910, %v2994
  %v3011 = vadd.f32 %v2911, %v2995
  %v3012 = vadd.f32 %v2912, %v2996
  %v3013 = vadd.f32 %v2913, %v2997
  %v3014 = vadd.f32 %v2914, %v2998
  %v3015 = vadd.f32 %v2915, %v2999
  %v3016 = vadd.f32 %v2916, %v3000
  %v3017 = vadd.f32 %v2917, %v3001
  %v3018 = vadd.f32 %v2918, %v3002
  %v3019 = vadd.f32 %v2919, %v3003
  %v3020 = vadd.f32 %v2920, %v3004
  %v3021 = vadd.f32 %v2921, %v3005
  %v3022 = vadd.f32 %v2922, %v3006
  %v3023 = vadd.f32 %v2923, %v3007
  %v3026 = vunpack.c.l.s4 1966171168
  %v3027 = vunpack.c.0.s8 %v3026
  %v3028 = vlaneseq
  %v3029 = vshrl.u32 %v3028, 7
  %v3030 = vsub.s32 %v3027, %v3029
  %v3031 = vrot.slane %v2721, %v3030
  %v3032 = vcombine.high %v3031, %v3031
  %v3034 = vunpack.c.l.s4 1966171168
  %v3035 = vunpack.c.0.s8 %v3034
  %v3036 = vlaneseq
  %v3037 = vshrl.u32 %v3036, 7
  %v3038 = vsub.s32 %v3035, %v3037
  %v3039 = vrot.slane %v3031, %v3038
  %v3041 = vunpack.c.l.s4 1966171168
  %v3042 = vunpack.c.0.s8 %v3041
  %v3043 = vlaneseq
  %v3044 = vshrl.u32 %v3043, 7
  %v3045 = vsub.s32 %v3042, %v3044
  %v3046 = vrot.slane %v3032, %v3045
  %v3047 = vlaneseq
  %v3048 = vshrl.u32 %v3047, 7
  %v3049 = vsub.s32 0, %v3048
  %v3050 = vrot.slane %v3039, %v3049
  %v3051 = vlaneseq
  %v3052 = vshrl.u32 %v3051, 7
  %v3053 = vsub.s32 0, %v3052
  %v3054 = vrot.slane %v3046, %v3053
  %v3057 = vadd.f32 %v3008, %v3050
  %v3058 = vadd.f32 %v3009, %v3050
  %v3059 = vadd.f32 %v3010, %v3050
  %v3060 = vadd.f32 %v3011, %v3050
  %v3061 = vadd.f32 %v3012, %v3050
  %v3062 = vadd.f32 %v3013, %v3050
  %v3063 = vadd.f32 %v3014, %v3050
  %v3064 = vadd.f32 %v3015, %v3050
  %v3065 = vadd.f32 %v3016, %v3054
  %v3066 = vadd.f32 %v3017, %v3054
  %v3067 = vadd.f32 %v3018, %v3054
  %v3068 = vadd.f32 %v3019, %v3054
  %v3069 = vadd.f32 %v3020, %v3054
  %v3070 = vadd.f32 %v3021, %v3054
  %v3071 = vadd.f32 %v3022, %v3054
  %v3072 = vadd.f32 %v3023, %v3054
  %v3073 = vlaneseq
  %v3074 = vshrl.u32 %v3073, 7
  %v3075 = vsub.s32 0, %v3074
  %v3076 = vrot.slane %v93, %v3075
  %v3077 = vadd.f32 %v3057, %v3076
  %v3078 = vadd.f32 %v3058, %v3076
  %v3079 = vadd.f32 %v3059, %v3076
  %v3080 = vadd.f32 %v3060, %v3076
  %v3081 = vadd.f32 %v3061, %v3076
  %v3082 = vadd.f32 %v3062, %v3076
  %v3083 = vadd.f32 %v3063, %v3076
  %v3084 = vadd.f32 %v3064, %v3076
  %v3085 = vadd.f32 %v3065, %v3076
  %v3086 = vadd.f32 %v3066, %v3076
  %v3087 = vadd.f32 %v3067, %v3076
  %v3088 = vadd.f32 %v3068, %v3076
  %v3089 = vadd.f32 %v3069, %v3076
  %v3090 = vadd.f32 %v3070, %v3076
  %v3091 = vadd.f32 %v3071, %v3076
  %v3092 = vadd.f32 %v3072, %v3076
  %v3093 = vmax.f32 %v3077, 0.0
  %v3094 = vmax.f32 %v3078, 0.0
  %v3095 = vmax.f32 %v3079, 0.0
  %v3096 = vmax.f32 %v3080, 0.0
  %v3097 = vmax.f32 %v3081, 0.0
  %v3098 = vmax.f32 %v3082, 0.0
  %v3099 = vmax.f32 %v3083, 0.0
  %v3100 = vmax.f32 %v3084, 0.0
  %v3101 = vmax.f32 %v3085, 0.0
  %v3102 = vmax.f32 %v3086, 0.0
  %v3103 = vmax.f32 %v3087, 0.0
  %v3104 = vmax.f32 %v3088, 0.0
  %v3105 = vmax.f32 %v3089, 0.0
  %v3106 = vmax.f32 %v3090, 0.0
  %v3107 = vmax.f32 %v3091, 0.0
  %v3108 = vmax.f32 %v3092, 0.0
  %v3110 = vsel %vm444, %v3093, 0
  %v3113 = vsel %vm444, %v3094, 0
  %v3116 = vsel %vm444, %v3095, 0
  %v3119 = vsel %vm444, %v3096, 0
  %v3122 = vsel %vm444, %v3097, 0
  %v3125 = vsel %vm444, %v3098, 0
  %v3128 = vsel %vm444, %v3099, 0
  %v3131 = vsel %vm444, %v3100, 0
  %v3134 = vsel %vm444, %v3101, 0
  %v3137 = vsel %vm444, %v3102, 0
  %v3140 = vsel %vm444, %v3103, 0
  %v3143 = vsel %vm444, %v3104, 0
  %v3146 = vsel %vm444, %v3105, 0
  %v3149 = vsel %vm444, %v3106, 0
  %v3152 = vsel %vm444, %v3107, 0
  %v3155 = vsel %vm444, %v3108, 0
  %3157 = vmatprep.subr.mxu0 0.0
  %3158 = vmatpush1.msra.mxu0 %v98
  %3159 = vmatprep.subr.mxu0 0.0
  %3160 = vmatpush1.msra.mxu0 %v99
  %3161 = vmatprep.subr.mxu0 0.0
  %3162 = vmatpush1.msra.mxu0 %v100
  %3163 = vmatprep.subr.mxu0 0.0
  %3164 = vmatpush1.msra.mxu0 %v101
  %3165 = vmatprep.subr.mxu0 0.0
  %3166 = vmatpush1.msra.mxu0 0.0
  %3167 = vmatprep.subr.mxu0 0.0
  %3168 = vmatpush1.msra.mxu0 0.0
  %3169 = vmatprep.subr.mxu0 0.0
  %3170 = vmatpush1.msra.mxu0 0.0
  %3171 = vmatprep.subr.mxu0 0.0
  %3172 = vmatpush1.msra.mxu0 0.0
  %3173 = vmatprep.subr.mxu0 0.0
  %3174 = vmatpush1.msra.mxu0 0.0
  %3175 = vmatprep.subr.mxu0 0.0
  %3176 = vmatpush1.msra.mxu0 0.0
  %3177 = vmatprep.subr.mxu0 0.0
  %3178 = vmatpush1.msra.mxu0 0.0
  %3179 = vmatprep.subr.mxu0 0.0
  %3180 = vmatpush1.msra.mxu0 0.0
  %3181 = vmatprep.subr.mxu0 0.0
  %3182 = vmatpush1.msra.mxu0 0.0
  %3183 = vmatprep.subr.mxu0 0.0
  %3184 = vmatpush1.msra.mxu0 0.0
  %3185 = vmatprep.subr.mxu0 0.0
  %3186 = vmatpush1.msra.mxu0 0.0
  %3187 = vmatprep.subr.mxu0 0.0
  %3188 = vmatpush1.msra.mxu0 0.0
  %3189 = vmatprep.subr.mxu0 0.0
  %3190 = vmatpush1.msra.mxu0 0.0
  %3191 = vmatprep.subr.mxu0 0.0
  %3192 = vmatpush1.msra.mxu0 0.0
  %3193 = vmatprep.subr.mxu0 0.0
  %3194 = vmatpush1.msra.mxu0 0.0
  %3195 = vmatprep.subr.mxu0 0.0
  %3196 = vmatpush1.msra.mxu0 0.0
  %3197 = vmatprep.subr.mxu0 0.0
  %3198 = vmatpush1.msra.mxu0 0.0
  %3199 = vmatprep.subr.mxu0 0.0
  %3200 = vmatpush1.msra.mxu0 0.0
  %3201 = vmatprep.subr.mxu0 0.0
  %3202 = vmatpush1.msra.mxu0 0.0
  %3203 = vmatprep.subr.mxu0 0.0
  %3204 = vmatpush1.msra.mxu0 0.0
  %3205 = vmatprep.subr.mxu0 0.0
  %3206 = vmatpush1.msra.mxu0 0.0
  %3207 = vmatprep.subr.mxu0 0.0
  %3208 = vmatpush1.msra.mxu0 0.0
  %3209 = vmatprep.subr.mxu0 0.0
  %3210 = vmatpush1.msra.mxu0 0.0
  %3211 = vmatprep.subr.mxu0 0.0
  %3212 = vmatpush1.msra.mxu0 0.0
  %3213 = vmatprep.subr.mxu0 0.0
  %3214 = vmatpush1.msra.mxu0 0.0
  %3215 = vmatprep.subr.mxu0 0.0
  %3216 = vmatpush1.msra.mxu0 0.0
  %3217 = vmatprep.subr.mxu0 0.0
  %3218 = vmatpush1.msra.mxu0 0.0
  %3219 = vmatprep.subr.mxu0 0.0
  %3220 = vmatpush1.msra.mxu0 0.0
  %3221 = vmatprep.mubr.f32.mxu0 0.0
  %3222 = vmatmul.mubr.f32.gmra.mrb[0].mxu0 %v3110
  %v3223 = vpop.f32.mrb[0].mxu0
  %v3224 = vadd.f32 0.0, %v3223
  %v3225 = vpop.f32.mrb[0].mxu0
  %3226 = vmatprep.mubr.f32.mxu0 0.0
  %3227 = vmatmul.mubr.f32.gmra.mrb[0].mxu0 %v3113
  %v3228 = vpop.f32.mrb[0].mxu0
  %v3229 = vadd.f32 0.0, %v3228
  %v3230 = vpop.f32.mrb[0].mxu0
  %3231 = vmatprep.mubr.f32.mxu0 0.0
  %3232 = vmatmul.mubr.f32.gmra.mrb[0].mxu0 %v3116
  %v3233 = vpop.f32.mrb[0].mxu0
  %v3234 = vadd.f32 0.0, %v3233
  %v3235 = vpop.f32.mrb[0].mxu0
  %3236 = vmatprep.mubr.f32.mxu0 0.0
  %3237 = vmatmul.mubr.f32.gmra.mrb[0].mxu0 %v3119
  %v3238 = vpop.f32.mrb[0].mxu0
  %v3239 = vadd.f32 0.0, %v3238
  %v3240 = vpop.f32.mrb[0].mxu0
  %3241 = vmatprep.mubr.f32.mxu0 0.0
  %3242 = vmatmul.mubr.f32.gmra.mrb[0].mxu0 %v3122
  %v3243 = vpop.f32.mrb[0].mxu0
  %v3244 = vadd.f32 0.0, %v3243
  %v3245 = vpop.f32.mrb[0].mxu0
  %3246 = vmatprep.mubr.f32.mxu0 0.0
  %3247 = vmatmul.mubr.f32.gmra.mrb[0].mxu0 %v3125
  %v3248 = vpop.f32.mrb[0].mxu0
  %v3249 = vadd.f32 0.0, %v3248
  %v3250 = vpop.f32.mrb[0].mxu0
  %3251 = vmatprep.mubr.f32.mxu0 0.0
  %3252 = vmatmul.mubr.f32.gmra.mrb[0].mxu0 %v3128
  %v3253 = vpop.f32.mrb[0].mxu0
  %v3254 = vadd.f32 0.0, %v3253
  %v3255 = vpop.f32.mrb[0].mxu0
  %3256 = vmatprep.mubr.f32.mxu0 0.0
  %3257 = vmatmul.mubr.f32.gmra.mrb[0].mxu0 %v3131
  %v3258 = vpop.f32.mrb[0].mxu0
  %v3259 = vadd.f32 0.0, %v3258
  %v3260 = vpop.f32.mrb[0].mxu0
  %3261 = vmatprep.mubr.f32.mxu0 0.0
  %3262 = vmatmul.mubr.f32.gmra.mrb[0].mxu0 %v3134
  %v3263 = vpop.f32.mrb[0].mxu0
  %v3264 = vadd.f32 0.0, %v3263
  %v3265 = vpop.f32.mrb[0].mxu0
  %3266 = vmatprep.mubr.f32.mxu0 0.0
  %3267 = vmatmul.mubr.f32.gmra.mrb[0].mxu0 %v3137
  %v3268 = vpop.f32.mrb[0].mxu0
  %v3269 = vadd.f32 0.0, %v3268
  %v3270 = vpop.f32.mrb[0].mxu0
  %3271 = vmatprep.mubr.f32.mxu0 0.0
  %3272 = vmatmul.mubr.f32.gmra.mrb[0].mxu0 %v3140
  %v3273 = vpop.f32.mrb[0].mxu0
  %v3274 = vadd.f32 0.0, %v3273
  %v3275 = vpop.f32.mrb[0].mxu0
  %3276 = vmatprep.mubr.f32.mxu0 0.0
  %3277 = vmatmul.mubr.f32.gmra.mrb[0].mxu0 %v3143
  %v3278 = vpop.f32.mrb[0].mxu0
  %v3279 = vadd.f32 0.0, %v3278
  %v3280 = vpop.f32.mrb[0].mxu0
  %3281 = vmatprep.mubr.f32.mxu0 0.0
  %3282 = vmatmul.mubr.f32.gmra.mrb[0].mxu0 %v3146
  %v3283 = vpop.f32.mrb[0].mxu0
  %v3284 = vadd.f32 0.0, %v3283
  %v3285 = vpop.f32.mrb[0].mxu0
  %3286 = vmatprep.mubr.f32.mxu0 0.0
  %3287 = vmatmul.mubr.f32.gmra.mrb[0].mxu0 %v3149
  %v3288 = vpop.f32.mrb[0].mxu0
  %v3289 = vadd.f32 0.0, %v3288
  %v3290 = vpop.f32.mrb[0].mxu0
  %3291 = vmatprep.mubr.f32.mxu0 0.0
  %3292 = vmatmul.mubr.f32.gmra.mrb[0].mxu0 %v3152
  %v3293 = vpop.f32.mrb[0].mxu0
  %v3294 = vadd.f32 0.0, %v3293
  %v3295 = vpop.f32.mrb[0].mxu0
  %3296 = vmatprep.mubr.f32.mxu0 0.0
  %3297 = vmatmul.mubr.f32.gmra.mrb[0].mxu0 %v3155
  %v3298 = vpop.f32.mrb[0].mxu0
  %v3299 = vadd.f32 0.0, %v3298
  %v3300 = vpop.f32.mrb[0].mxu0
  %3301 = vdwg.mxu0
  %v3302 = vadd.f32 %v1626, %v3224
  %v3303 = vadd.f32 %v1627, %v3229
  %v3304 = vadd.f32 %v1628, %v3234
  %v3305 = vadd.f32 %v1629, %v3239
  %v3306 = vadd.f32 %v1630, %v3244
  %v3307 = vadd.f32 %v1631, %v3249
  %v3308 = vadd.f32 %v1632, %v3254
  %v3309 = vadd.f32 %v1633, %v3259
  %v3310 = vadd.f32 %v1634, %v3264
  %v3311 = vadd.f32 %v1635, %v3269
  %v3312 = vadd.f32 %v1636, %v3274
  %v3313 = vadd.f32 %v1637, %v3279
  %v3314 = vadd.f32 %v1638, %v3284
  %v3315 = vadd.f32 %v1639, %v3289
  %v3316 = vadd.f32 %v1640, %v3294
  %v3317 = vadd.f32 %v1641, %v3299
  %v3318 = vlaneseq
  %v3319 = vshrl.u32 %v3318, 7
  %v3320 = vsub.s32 0, %v3319
  %v3321 = vrot.slane %v103, %v3320
  %v3322 = vadd.f32 %v3302, %v3321
  %v3323 = vadd.f32 %v3303, %v3321
  %v3324 = vadd.f32 %v3304, %v3321
  %v3325 = vadd.f32 %v3305, %v3321
  %v3326 = vadd.f32 %v3306, %v3321
  %v3327 = vadd.f32 %v3307, %v3321
  %v3328 = vadd.f32 %v3308, %v3321
  %v3329 = vadd.f32 %v3309, %v3321
  %v3330 = vadd.f32 %v3310, %v3321
  %v3331 = vadd.f32 %v3311, %v3321
  %v3332 = vadd.f32 %v3312, %v3321
  %v3333 = vadd.f32 %v3313, %v3321
  %v3334 = vadd.f32 %v3314, %v3321
  %v3335 = vadd.f32 %v3315, %v3321
  %v3336 = vadd.f32 %v3316, %v3321
  %v3337 = vadd.f32 %v3317, %v3321
  %vm3338 = vcmask 23552
  %3339 = vst.msk [vmem:[%s5] sm:$0xff] %vm3338, %v3322
  %3340 = vst.msk [vmem:[%s5 + $0x8] sm:$0xff] %vm3338, %v3323
  %3341 = vst.msk [vmem:[%s5 + $0x10] sm:$0xff] %vm3338, %v3324
  %3342 = vst.msk [vmem:[%s5 + $0x18] sm:$0xff] %vm3338, %v3325
  %3343 = vst.msk [vmem:[%s5 + $0x20] sm:$0xff] %vm3338, %v3326
  %3344 = vst.msk [vmem:[%s5 + $0x28] sm:$0xff] %vm3338, %v3327
  %3345 = vst.msk [vmem:[%s5 + $0x30] sm:$0xff] %vm3338, %v3328
  %3346 = vst.msk [vmem:[%s5 + $0x38] sm:$0xff] %vm3338, %v3329
  %3347 = vst.msk [vmem:[%s5 + $0x40] sm:$0xff] %vm3338, %v3330
  %3348 = vst.msk [vmem:[%s5 + $0x48] sm:$0xff] %vm3338, %v3331
  %3349 = vst.msk [vmem:[%s5 + $0x50] sm:$0xff] %vm3338, %v3332
  %3350 = vst.msk [vmem:[%s5 + $0x58] sm:$0xff] %vm3338, %v3333
  %3351 = vst.msk [vmem:[%s5 + $0x60] sm:$0xff] %vm3338, %v3334
  %3352 = vst.msk [vmem:[%s5 + $0x68] sm:$0xff] %vm3338, %v3335
  %3353 = vst.msk [vmem:[%s5 + $0x70] sm:$0xff] %vm3338, %v3336
  %3354 = vst.msk [vmem:[%s5 + $0x78] sm:$0xff] %vm3338, %v3337
  // Predicated region
  $region22: #{flow_arbitrary.1} parent=0 // pred_check
    _
  $region23: #{flow_arbitrary.1} parent=0 // pred_check_branch
    %3356 = sbr.rel (0) target = $region25
  $region24: #{flow_arbitrary.1} parent=0 // pred_region
    _
  $region25: #{flow_arbitrary.1} parent=0 // pred_fallthru
    _
  // Predicated region
  $region26: #{flow_arbitrary.1} parent=0 // pred_check
    _
  $region27: #{flow_arbitrary.1} parent=0 // pred_check_branch
    %3358 = sbr.rel (0) target = $region29
  $region28: #{flow_arbitrary.1} parent=0 // pred_region
    _
  $region29: #{flow_arbitrary.1} parent=0 // pred_fallthru
    _

</llo_original>
